<compile_context>
chip_gen: v7x
topology: tpu7x:2x2x1
jax: 0.10.0
libtpu: 0.0.40
codegen_flags: <defaults>
</compile_context>

<pallas_src>
import functools
import math

import jax
import jax.numpy as jnp
from jax import lax
from jax.experimental import pallas as pl
from jax.experimental.pallas import tpu as pltpu


def _inverted_residual_kernel(x_ref, mask_ref, w_exp_ref, b1_ref, w_dw_ref,
                              b2_ref, w_eca_ref, w_lin_ref, b_lin_ref, o_ref,
                              *, H, W, K, B_blk):
    HW = H * W
    P = K // 2
    Cm = w_exp_ref.shape[0]
    k_eca = w_eca_ref.shape[0]

    # ---- grid-step invariants: load once, reuse across the unrolled images --
    w_exp = w_exp_ref[...]                      # (Cm, Cin)   BN scale folded in
    b1 = b1_ref[...]                            # (Cm, 1)
    w_dw = w_dw_ref[...]                        # (K*K, Cm, 1) BN scale folded in
    b2 = b2_ref[...]                            # (Cm, 1)
    w_eca = w_eca_ref[...]                      # (k_eca, Cm, 1) boundary-masked
    w_lin = w_lin_ref[...]                      # (Cout, Cm)
    b_lin = b_lin_ref[...]                      # (Cout, 1)
    masks = mask_ref[...]                       # (K*K, 1, HW) {0., 1.}

    inv_hw = 1.0 / float(HW)
    c_tap = P * K + P                           # center tap: mask is all-ones
    half = k_eca // 2

    for b in range(B_blk):                      # static unroll over images/step
        x = x_ref[b].astype(jnp.float32)        # (Cin, HW)

        # ---- expand 1x1 conv (BN folded) + bias + ReLU6 (MXU) ---------------
        h = jnp.dot(w_exp, x, preferred_element_type=jnp.float32)
        h = jnp.clip(h + b1, 0.0, 6.0)          # (Cm, HW)

        # ---- depthwise KxK conv, stride 1: lane rolls + precomputed masks ---
        d = h * w_dw[c_tap]
        for dy in range(-P, P + 1):
            for dx in range(-P, P + 1):
                if dy == 0 and dx == 0:
                    continue
                t = (dy + P) * K + (dx + P)
                off = dy * W + dx
                tap = pltpu.roll(h, (-off) % HW, axis=1)      # XLU lane rotate
                d = d + (tap * masks[t]) * w_dw[t]
        d = d + b2                               # folded BN bias

        # ---- ECA: GAP -> k-tap channel conv (sublane rolls) -> sigmoid ------
        pooled = jnp.sum(d, axis=1, keepdims=True) * inv_hw   # (Cm, 1)
        logit = pooled * w_eca[half]                          # center tap
        for j in range(k_eca):
            if j == half:
                continue
            tap = pltpu.roll(pooled, (-(j - half)) % Cm, axis=0)
            logit = logit + tap * w_eca[j]       # boundary zeros folded into w
        att = jax.nn.sigmoid(logit)              # (Cm, 1)

        # ---- linear 1x1 conv (+bias) + identity residual (MXU) --------------
        out = jnp.dot(w_lin, d * att, preferred_element_type=jnp.float32)
        o_ref[b] = (out + b_lin + x).astype(o_ref.dtype)


def _dw_boundary_masks(H, W, K):
    """Per-tap zero-padding masks, shape (K*K, 1, H*W), float {0, 1}."""
    P = K // 2
    p = jnp.arange(H * W, dtype=jnp.int32)
    px = p % W
    py = p // W
    planes = []
    for dy in range(-P, P + 1):
        for dx in range(-P, P + 1):
            ok = ((px + dx >= 0) & (px + dx < W) &
                  (py + dy >= 0) & (py + dy < H))
            planes.append(ok)
    return jnp.stack(planes, axis=0).astype(jnp.float32)[:, None, :]


def _vmem_limit_bytes():
    cap = 64 * 1024 * 1024                      # conservative fallback (v7x-sized)
    try:
        info = pltpu.get_tpu_info()
        cap = int(getattr(info, "vmem_capacity_bytes", cap))
    except Exception:
        pass
    # ~3/4 of physical VMEM: ~48 MiB on v7x, ~96 MiB on v5e/v6e.
    return min(cap * 3 // 4, 100 * 1024 * 1024)


def _pick_batch_block(N, Cin, Cout, Cm, HW, itemsize, vmem_limit):
    """Images per grid step: biggest divisor of N (<=8) that fits the budget."""
    budget = vmem_limit // 2
    live_f32 = 6 * Cm * HW * 4                  # h/d/tap f32 live set, one image
    best = 1
    for b in range(1, min(N, 8) + 1):
        if N % b:
            continue
        io = 2 * b * (Cin + Cout) * HW * itemsize   # double-buffered x/out blocks
        if live_f32 + io > budget:
            continue
        if N >= 4 and N // b < 2:
            continue                            # keep >=2 steps for megacore
        best = b
    return best


def inverted_residual(x_nchw, params, *, stride=1):
    """PyTorch-style NCHW entry point: (N, Cin, H, W) -> (N, Cout, H, W)."""
    (w_exp_f, b1, w_dw_f, b2, w_eca_m, w_lin_t, b_lin) = params
    if stride != 1:
        raise NotImplementedError("stride > 1 / down_samples not implemented")
    N, Cin, H, W = x_nchw.shape
    Cm = w_exp_f.shape[0]
    Cout = w_lin_t.shape[0]
    KK = w_dw_f.shape[0]
    K = int(round(math.sqrt(KK)))
    k_eca = w_eca_m.shape[0]
    HW = H * W
    if Cin != Cout:
        raise NotImplementedError("identity residual requires Cin == Cout")

    vmem_limit = _vmem_limit_bytes()
    B_blk = _pick_batch_block(N, Cin, Cout, Cm, HW, x_nchw.dtype.itemsize,
                              vmem_limit)
    G = N // B_blk

    x_flat = x_nchw.reshape(N, Cin, HW)          # free reshape, channel-major
    dw_mask = _dw_boundary_masks(H, W, K)        # (K*K, 1, HW)

    kernel = functools.partial(_inverted_residual_kernel,
                               H=H, W=W, K=K, B_blk=B_blk)
    c2 = lambda g: (0, 0)
    c3 = lambda g: (0, 0, 0)
    out = pl.pallas_call(
        kernel,
        out_shape=jax.ShapeDtypeStruct((N, Cout, HW), x_nchw.dtype),
        grid_spec=pltpu.PrefetchScalarGridSpec(
            num_scalar_prefetch=0,
            grid=(G,),
            in_specs=[
                pl.BlockSpec((B_blk, Cin, HW), lambda g: (g, 0, 0)),
                pl.BlockSpec((KK, 1, HW), c3),       # depthwise boundary masks
                pl.BlockSpec((Cm, Cin), c2),         # expand weight (BN folded)
                pl.BlockSpec((Cm, 1), c2),           # expand/BN bias
                pl.BlockSpec((KK, Cm, 1), c3),       # depthwise weight (BN folded)
                pl.BlockSpec((Cm, 1), c2),           # depthwise/BN bias
                pl.BlockSpec((k_eca, Cm, 1), c3),    # ECA weight (boundary folded)
                pl.BlockSpec((Cout, Cm), c2),        # linear weight
                pl.BlockSpec((Cout, 1), c2),         # linear bias
            ],
            out_specs=pl.BlockSpec((B_blk, Cout, HW), lambda g: (g, 0, 0)),
        ),
        compiler_params=pltpu.CompilerParams(
            dimension_semantics=("parallel",),
            vmem_limit_bytes=vmem_limit),
    )(x_flat, dw_mask, w_exp_f, b1, w_dw_f, b2, w_eca_m, w_lin_t, b_lin)
    return out.reshape(N, Cout, H, W)


# ---------------------------------------------------------------------------
# Module-style parameter construction and BN/layout folding.
# ---------------------------------------------------------------------------
def init_params(key, in_channels, out_channels, kernel_size=3):
    """Raw, module-style parameters (mirrors the PyTorch __init__ shapes)."""
    mid = in_channels * 4
    keys = jax.random.split(key, 13)
    raw = {}
    raw["w_exp"] = 0.2 * jax.random.normal(keys[0], (mid, in_channels, 1, 1), jnp.float32)
    raw["g1"] = 1.0 + 0.1 * jax.random.normal(keys[1], (mid,), jnp.float32)
    raw["be1"] = 0.1 * jax.random.normal(keys[2], (mid,), jnp.float32)
    raw["m1"] = 0.1 * jax.random.normal(keys[3], (mid,), jnp.float32)
    raw["v1"] = 0.5 + jax.random.uniform(keys[4], (mid,), jnp.float32)
    raw["w_dw"] = 0.2 * jax.random.normal(
        keys[5], (mid, 1, kernel_size, kernel_size), jnp.float32)
    raw["g2"] = 1.0 + 0.1 * jax.random.normal(keys[6], (mid,), jnp.float32)
    raw["be2"] = 0.1 * jax.random.normal(keys[7], (mid,), jnp.float32)
    raw["m2"] = 0.1 * jax.random.normal(keys[8], (mid,), jnp.float32)
    raw["v2"] = 0.5 + jax.random.uniform(keys[9], (mid,), jnp.float32)
    # ECA adaptive kernel size (gamma=2, beta=1), Conv1d(1, 1, k, bias=False)
    t = int(abs(math.log(mid, 2) + 1.0) / 2.0)
    k_eca = max(t if t % 2 else t + 1, 3)
    raw["w_eca"] = 0.5 * jax.random.normal(keys[10], (k_eca,), jnp.float32)
    raw["w_lin"] = 0.2 * jax.random.normal(keys[11], (out_channels, mid, 1, 1), jnp.float32)
    raw["b_lin"] = 0.1 * jax.random.normal(keys[12], (out_channels,), jnp.float32)
    return raw


def fold_params(raw, eps=1e-5):
    """Fold BN scales / ECA boundary masks into weights; reorient for the kernel."""
    mid = raw["w_exp"].shape[0]
    K = raw["w_dw"].shape[-1]
    s1 = raw["g1"] / jnp.sqrt(raw["v1"] + eps)
    b1 = raw["be1"] - raw["m1"] * s1
    w_exp_f = raw["w_exp"][:, :, 0, 0] * s1[:, None]             # (Cm, Cin)
    s2 = raw["g2"] / jnp.sqrt(raw["v2"] + eps)
    b2 = raw["be2"] - raw["m2"] * s2
    w_dw_sc = raw["w_dw"].reshape(mid, K * K) * s2[:, None]      # (Cm, K*K)
    w_dw_f = jnp.transpose(w_dw_sc, (1, 0))[..., None]           # (K*K, Cm, 1)
    # ECA: fold the zero-padding boundary into per-(tap, channel) weights.
    k_eca = raw["w_eca"].shape[0]
    half = k_eca // 2
    cc = jnp.arange(mid)[None, :]                                # (1, Cm)
    jj = jnp.arange(k_eca)[:, None]                              # (k_eca, 1)
    src = cc + jj - half
    valid = (src >= 0) & (src < mid)
    w_eca_m = jnp.where(valid, raw["w_eca"][:, None], 0.0)[..., None]  # (k_eca, Cm, 1)
    w_lin_t = raw["w_lin"][:, :, 0, 0]                           # (Cout, Cm)
    b_lin = raw["b_lin"].reshape(-1, 1)                          # (Cout, 1)
    return (w_exp_f, b1.reshape(mid, 1), w_dw_f, b2.reshape(mid, 1),
            w_eca_m, w_lin_t, b_lin)


# ---------------------------------------------------------------------------
# Plain-JAX reference (NCHW, unfused, unfolded) for correctness checking.
# ---------------------------------------------------------------------------
def reference_nchw(x, raw, eps=1e-5):
    mid = raw["w_exp"].shape[0]
    K = raw["w_dw"].shape[-1]
    P = K // 2
    dn = ("NCHW", "OIHW", "NCHW")

    def bn(z, g, b, m, v):
        return (z - m[None, :, None, None]) / jnp.sqrt(v[None, :, None, None] + eps) \
            * g[None, :, None, None] + b[None, :, None, None]

    h = lax.conv_general_dilated(x, raw["w_exp"], (1, 1), [(0, 0), (0, 0)],
                                 dimension_numbers=dn)
    h = jnp.clip(bn(h, raw["g1"], raw["be1"], raw["m1"], raw["v1"]), 0.0, 6.0)
    d = lax.conv_general_dilated(h, raw["w_dw"], (1, 1), [(P, P), (P, P)],
                                 dimension_numbers=dn, feature_group_count=mid)
    d = bn(d, raw["g2"], raw["be2"], raw["m2"], raw["v2"])
    pooled = jnp.mean(d, axis=(2, 3))                            # (N, mid)
    w_eca = raw["w_eca"]
    k = w_eca.shape[0]
    pad = k // 2
    pp = jnp.pad(pooled, ((0, 0), (pad, pad)))
    logit = sum(w_eca[j] * pp[:, j:j + mid] for j in range(k))
    att = jax.nn.sigmoid(logit)
    s = d * att[:, :, None, None]
    out = lax.conv_general_dilated(s, raw["w_lin"], (1, 1), [(0, 0), (0, 0)],
                                   dimension_numbers=dn)
    out = out + raw["b_lin"][None, :, None, None]
    return out + x


if __name__ == "__main__":
    key = jax.random.PRNGKey(0)
    kx, kp = jax.random.split(key)

    N, Cin, Cout, H, W = 2, 4, 4, 16, 16   # in_channels == out_channels, stride=1
    x = jax.random.normal(kx, (N, Cin, H, W), jnp.float32)
    raw = init_params(kp, Cin, Cout, kernel_size=3)
    params = fold_params(raw)

    out = inverted_residual(x, params)
    out = jax.block_until_ready(out)
    assert out.shape == (N, Cout, H, W)

    ref = reference_nchw(x, raw)
    max_err = float(jnp.max(jnp.abs(out - ref)))
    if not (max_err < 1e-3):
        raise AssertionError(f"kernel/reference mismatch: max abs err {max_err}")

    print("KERNEL_OK")
</pallas_src>

<mosaic_0001>
module attributes {stable_mosaic.version = 11 : i64} {
  func.func @_inverted_residual_kernel(%arg0: i32, %arg1: memref<2x4x256xf32, #tpu.memory_space<vmem>>, %arg2: memref<9x1x256xf32, #tpu.memory_space<vmem>>, %arg3: memref<16x4xf32, #tpu.memory_space<vmem>>, %arg4: memref<16x1xf32, #tpu.memory_space<vmem>>, %arg5: memref<9x16x1xf32, #tpu.memory_space<vmem>>, %arg6: memref<16x1xf32, #tpu.memory_space<vmem>>, %arg7: memref<3x16x1xf32, #tpu.memory_space<vmem>>, %arg8: memref<4x16xf32, #tpu.memory_space<vmem>>, %arg9: memref<4x1xf32, #tpu.memory_space<vmem>>, %arg10: memref<2x4x256xf32, #tpu.memory_space<vmem>>) attributes {dimension_semantics = [#tpu.dimension_semantics<parallel>], iteration_bounds = array<i64: 1>, scalar_prefetch = 0 : i64, scratch_operands = 0 : i64, tpu.core_type = #tpu.core_type<tc>, window_params = [{transform_indices = @transform_0, window_bounds = array<i64: 2, 4, 256>}, {pipeline_mode = #tpu.pipeline_mode<synchronous>, transform_indices = @transform_1, window_bounds = array<i64: 9, 1, 256>}, {pipeline_mode = #tpu.pipeline_mode<synchronous>, transform_indices = @transform_2, window_bounds = array<i64: 16, 4>}, {pipeline_mode = #tpu.pipeline_mode<synchronous>, transform_indices = @transform_3, window_bounds = array<i64: 16, 1>}, {pipeline_mode = #tpu.pipeline_mode<synchronous>, transform_indices = @transform_4, window_bounds = array<i64: 9, 16, 1>}, {pipeline_mode = #tpu.pipeline_mode<synchronous>, transform_indices = @transform_5, window_bounds = array<i64: 16, 1>}, {pipeline_mode = #tpu.pipeline_mode<synchronous>, transform_indices = @transform_6, window_bounds = array<i64: 3, 16, 1>}, {pipeline_mode = #tpu.pipeline_mode<synchronous>, transform_indices = @transform_7, window_bounds = array<i64: 4, 16>}, {pipeline_mode = #tpu.pipeline_mode<synchronous>, transform_indices = @transform_8, window_bounds = array<i64: 4, 1>}, {transform_indices = @transform_9, window_bounds = array<i64: 2, 4, 256>}]} {
    %c0 = arith.constant 0 : index
    %c0_0 = arith.constant 0 : index
    %0 = vector.load %arg3[%c0, %c0_0] : memref<16x4xf32, #tpu.memory_space<vmem>>, vector<16x4xf32>
    %c0_1 = arith.constant 0 : index
    %c0_2 = arith.constant 0 : index
    %1 = vector.load %arg4[%c0_1, %c0_2] : memref<16x1xf32, #tpu.memory_space<vmem>>, vector<16x1xf32>
    %c0_3 = arith.constant 0 : index
    %c0_4 = arith.constant 0 : index
    %c0_5 = arith.constant 0 : index
    %2 = vector.load %arg5[%c0_3, %c0_4, %c0_5] : memref<9x16x1xf32, #tpu.memory_space<vmem>>, vector<9x16x1xf32>
    %c0_6 = arith.constant 0 : index
    %c0_7 = arith.constant 0 : index
    %3 = vector.load %arg6[%c0_6, %c0_7] : memref<16x1xf32, #tpu.memory_space<vmem>>, vector<16x1xf32>
    %c0_8 = arith.constant 0 : index
    %c0_9 = arith.constant 0 : index
    %c0_10 = arith.constant 0 : index
    %4 = vector.load %arg7[%c0_8, %c0_9, %c0_10] : memref<3x16x1xf32, #tpu.memory_space<vmem>>, vector<3x16x1xf32>
    %c0_11 = arith.constant 0 : index
    %c0_12 = arith.constant 0 : index
    %5 = vector.load %arg8[%c0_11, %c0_12] : memref<4x16xf32, #tpu.memory_space<vmem>>, vector<4x16xf32>
    %c0_13 = arith.constant 0 : index
    %c0_14 = arith.constant 0 : index
    %6 = vector.load %arg9[%c0_13, %c0_14] : memref<4x1xf32, #tpu.memory_space<vmem>>, vector<4x1xf32>
    %c0_15 = arith.constant 0 : index
    %c0_16 = arith.constant 0 : index
    %c0_17 = arith.constant 0 : index
    %7 = vector.load %arg2[%c0_15, %c0_16, %c0_17] : memref<9x1x256xf32, #tpu.memory_space<vmem>>, vector<9x1x256xf32>
    %c0_18 = arith.constant 0 : index
    %c0_19 = arith.constant 0 : index
    %c0_20 = arith.constant 0 : index
    %8 = vector.load %arg1[%c0_18, %c0_19, %c0_20] : memref<2x4x256xf32, #tpu.memory_space<vmem>>, vector<1x4x256xf32>
    %9 = vector.shape_cast %8 : vector<1x4x256xf32> to vector<4x256xf32>
    %cst = arith.constant dense<0.000000e+00> : vector<16x256xf32>
    %10 = tpu.matmul %0, %9, %cst {dimension_numbers = #tpu.dot_dimension_numbers<[1], [0], [0], [1], [0, 0, 1, 1], [], []>} : vector<16x4xf32>, vector<4x256xf32>, vector<16x256xf32> -> vector<16x256xf32>
    %11 = vector.broadcast %1 : vector<16x1xf32> to vector<16x256xf32>
    %12 = arith.addf %10, %11 : vector<16x256xf32>
    %cst_21 = arith.constant 0.000000e+00 : f32
    %cst_22 = arith.constant 6.000000e+00 : f32
    %13 = vector.broadcast %cst_21 : f32 to vector<16x256xf32>
    %14 = arith.maximumf %13, %12 : vector<16x256xf32>
    %15 = vector.broadcast %cst_22 : f32 to vector<16x256xf32>
    %16 = arith.minimumf %15, %14 : vector<16x256xf32>
    %17 = vector.extract_strided_slice %2 {offsets = [4, 0, 0], sizes = [1, 16, 1], strides = [1, 1, 1]} : vector<9x16x1xf32> to vector<1x16x1xf32>
    %18 = vector.shape_cast %17 : vector<1x16x1xf32> to vector<16x1xf32>
    %19 = vector.broadcast %18 : vector<16x1xf32> to vector<16x256xf32>
    %20 = arith.mulf %16, %19 : vector<16x256xf32>
    %c17_i32 = arith.constant 17 : i32
    %21 = tpu.dynamic_rotate %16 by %c17_i32 dim 1 : vector<16x256xf32>, i32 -> vector<16x256xf32>
    %22 = vector.extract_strided_slice %7 {offsets = [0, 0, 0], sizes = [1, 1, 256], strides = [1, 1, 1]} : vector<9x1x256xf32> to vector<1x1x256xf32>
    %23 = vector.shape_cast %22 : vector<1x1x256xf32> to vector<1x256xf32>
    %24 = vector.broadcast %23 : vector<1x256xf32> to vector<16x256xf32>
    %25 = arith.mulf %21, %24 : vector<16x256xf32>
    %26 = vector.extract_strided_slice %2 {offsets = [0, 0, 0], sizes = [1, 16, 1], strides = [1, 1, 1]} : vector<9x16x1xf32> to vector<1x16x1xf32>
    %27 = vector.shape_cast %26 : vector<1x16x1xf32> to vector<16x1xf32>
    %28 = vector.broadcast %27 : vector<16x1xf32> to vector<16x256xf32>
    %29 = arith.mulf %25, %28 : vector<16x256xf32>
    %30 = arith.addf %20, %29 : vector<16x256xf32>
    %c16_i32 = arith.constant 16 : i32
    %31 = tpu.dynamic_rotate %16 by %c16_i32 dim 1 : vector<16x256xf32>, i32 -> vector<16x256xf32>
    %32 = vector.extract_strided_slice %7 {offsets = [1, 0, 0], sizes = [1, 1, 256], strides = [1, 1, 1]} : vector<9x1x256xf32> to vector<1x1x256xf32>
    %33 = vector.shape_cast %32 : vector<1x1x256xf32> to vector<1x256xf32>
    %34 = vector.broadcast %33 : vector<1x256xf32> to vector<16x256xf32>
    %35 = arith.mulf %31, %34 : vector<16x256xf32>
    %36 = vector.extract_strided_slice %2 {offsets = [1, 0, 0], sizes = [1, 16, 1], strides = [1, 1, 1]} : vector<9x16x1xf32> to vector<1x16x1xf32>
    %37 = vector.shape_cast %36 : vector<1x16x1xf32> to vector<16x1xf32>
    %38 = vector.broadcast %37 : vector<16x1xf32> to vector<16x256xf32>
    %39 = arith.mulf %35, %38 : vector<16x256xf32>
    %40 = arith.addf %30, %39 : vector<16x256xf32>
    %c15_i32 = arith.constant 15 : i32
    %41 = tpu.dynamic_rotate %16 by %c15_i32 dim 1 : vector<16x256xf32>, i32 -> vector<16x256xf32>
    %42 = vector.extract_strided_slice %7 {offsets = [2, 0, 0], sizes = [1, 1, 256], strides = [1, 1, 1]} : vector<9x1x256xf32> to vector<1x1x256xf32>
    %43 = vector.shape_cast %42 : vector<1x1x256xf32> to vector<1x256xf32>
    %44 = vector.broadcast %43 : vector<1x256xf32> to vector<16x256xf32>
    %45 = arith.mulf %41, %44 : vector<16x256xf32>
    %46 = vector.extract_strided_slice %2 {offsets = [2, 0, 0], sizes = [1, 16, 1], strides = [1, 1, 1]} : vector<9x16x1xf32> to vector<1x16x1xf32>
    %47 = vector.shape_cast %46 : vector<1x16x1xf32> to vector<16x1xf32>
    %48 = vector.broadcast %47 : vector<16x1xf32> to vector<16x256xf32>
    %49 = arith.mulf %45, %48 : vector<16x256xf32>
    %50 = arith.addf %40, %49 : vector<16x256xf32>
    %c1_i32 = arith.constant 1 : i32
    %51 = tpu.dynamic_rotate %16 by %c1_i32 dim 1 : vector<16x256xf32>, i32 -> vector<16x256xf32>
    %52 = vector.extract_strided_slice %7 {offsets = [3, 0, 0], sizes = [1, 1, 256], strides = [1, 1, 1]} : vector<9x1x256xf32> to vector<1x1x256xf32>
    %53 = vector.shape_cast %52 : vector<1x1x256xf32> to vector<1x256xf32>
    %54 = vector.broadcast %53 : vector<1x256xf32> to vector<16x256xf32>
    %55 = arith.mulf %51, %54 : vector<16x256xf32>
    %56 = vector.extract_strided_slice %2 {offsets = [3, 0, 0], sizes = [1, 16, 1], strides = [1, 1, 1]} : vector<9x16x1xf32> to vector<1x16x1xf32>
    %57 = vector.shape_cast %56 : vector<1x16x1xf32> to vector<16x1xf32>
    %58 = vector.broadcast %57 : vector<16x1xf32> to vector<16x256xf32>
    %59 = arith.mulf %55, %58 : vector<16x256xf32>
    %60 = arith.addf %50, %59 : vector<16x256xf32>
    %c255_i32 = arith.constant 255 : i32
    %61 = tpu.dynamic_rotate %16 by %c255_i32 dim 1 : vector<16x256xf32>, i32 -> vector<16x256xf32>
    %62 = vector.extract_strided_slice %7 {offsets = [5, 0, 0], sizes = [1, 1, 256], strides = [1, 1, 1]} : vector<9x1x256xf32> to vector<1x1x256xf32>
    %63 = vector.shape_cast %62 : vector<1x1x256xf32> to vector<1x256xf32>
    %64 = vector.broadcast %63 : vector<1x256xf32> to vector<16x256xf32>
    %65 = arith.mulf %61, %64 : vector<16x256xf32>
    %66 = vector.extract_strided_slice %2 {offsets = [5, 0, 0], sizes = [1, 16, 1], strides = [1, 1, 1]} : vector<9x16x1xf32> to vector<1x16x1xf32>
    %67 = vector.shape_cast %66 : vector<1x16x1xf32> to vector<16x1xf32>
    %68 = vector.broadcast %67 : vector<16x1xf32> to vector<16x256xf32>
    %69 = arith.mulf %65, %68 : vector<16x256xf32>
    %70 = arith.addf %60, %69 : vector<16x256xf32>
    %c241_i32 = arith.constant 241 : i32
    %71 = tpu.dynamic_rotate %16 by %c241_i32 dim 1 : vector<16x256xf32>, i32 -> vector<16x256xf32>
    %72 = vector.extract_strided_slice %7 {offsets = [6, 0, 0], sizes = [1, 1, 256], strides = [1, 1, 1]} : vector<9x1x256xf32> to vector<1x1x256xf32>
    %73 = vector.shape_cast %72 : vector<1x1x256xf32> to vector<1x256xf32>
    %74 = vector.broadcast %73 : vector<1x256xf32> to vector<16x256xf32>
    %75 = arith.mulf %71, %74 : vector<16x256xf32>
    %76 = vector.extract_strided_slice %2 {offsets = [6, 0, 0], sizes = [1, 16, 1], strides = [1, 1, 1]} : vector<9x16x1xf32> to vector<1x16x1xf32>
    %77 = vector.shape_cast %76 : vector<1x16x1xf32> to vector<16x1xf32>
    %78 = vector.broadcast %77 : vector<16x1xf32> to vector<16x256xf32>
    %79 = arith.mulf %75, %78 : vector<16x256xf32>
    %80 = arith.addf %70, %79 : vector<16x256xf32>
    %c240_i32 = arith.constant 240 : i32
    %81 = tpu.dynamic_rotate %16 by %c240_i32 dim 1 : vector<16x256xf32>, i32 -> vector<16x256xf32>
    %82 = vector.extract_strided_slice %7 {offsets = [7, 0, 0], sizes = [1, 1, 256], strides = [1, 1, 1]} : vector<9x1x256xf32> to vector<1x1x256xf32>
    %83 = vector.shape_cast %82 : vector<1x1x256xf32> to vector<1x256xf32>
    %84 = vector.broadcast %83 : vector<1x256xf32> to vector<16x256xf32>
    %85 = arith.mulf %81, %84 : vector<16x256xf32>
    %86 = vector.extract_strided_slice %2 {offsets = [7, 0, 0], sizes = [1, 16, 1], strides = [1, 1, 1]} : vector<9x16x1xf32> to vector<1x16x1xf32>
    %87 = vector.shape_cast %86 : vector<1x16x1xf32> to vector<16x1xf32>
    %88 = vector.broadcast %87 : vector<16x1xf32> to vector<16x256xf32>
    %89 = arith.mulf %85, %88 : vector<16x256xf32>
    %90 = arith.addf %80, %89 : vector<16x256xf32>
    %c239_i32 = arith.constant 239 : i32
    %91 = tpu.dynamic_rotate %16 by %c239_i32 dim 1 : vector<16x256xf32>, i32 -> vector<16x256xf32>
    %92 = vector.extract_strided_slice %7 {offsets = [8, 0, 0], sizes = [1, 1, 256], strides = [1, 1, 1]} : vector<9x1x256xf32> to vector<1x1x256xf32>
    %93 = vector.shape_cast %92 : vector<1x1x256xf32> to vector<1x256xf32>
    %94 = vector.broadcast %93 : vector<1x256xf32> to vector<16x256xf32>
    %95 = arith.mulf %91, %94 : vector<16x256xf32>
    %96 = vector.extract_strided_slice %2 {offsets = [8, 0, 0], sizes = [1, 16, 1], strides = [1, 1, 1]} : vector<9x16x1xf32> to vector<1x16x1xf32>
    %97 = vector.shape_cast %96 : vector<1x16x1xf32> to vector<16x1xf32>
    %98 = vector.broadcast %97 : vector<16x1xf32> to vector<16x256xf32>
    %99 = arith.mulf %95, %98 : vector<16x256xf32>
    %100 = arith.addf %90, %99 : vector<16x256xf32>
    %101 = vector.broadcast %3 : vector<16x1xf32> to vector<16x256xf32>
    %102 = arith.addf %100, %101 : vector<16x256xf32>
    %cst_23 = arith.constant dense<0.000000e+00> : vector<16xf32>
    %103 = vector.multi_reduction <add>, %102, %cst_23 [1] : vector<16x256xf32> to vector<16xf32>
    %104 = vector.shape_cast %103 : vector<16xf32> to vector<16x1xf32>
    %cst_24 = arith.constant 3.906250e-03 : f32
    %105 = vector.broadcast %cst_24 : f32 to vector<16x1xf32>
    %106 = arith.mulf %104, %105 : vector<16x1xf32>
    %107 = vector.extract_strided_slice %4 {offsets = [1, 0, 0], sizes = [1, 16, 1], strides = [1, 1, 1]} : vector<3x16x1xf32> to vector<1x16x1xf32>
    %108 = vector.shape_cast %107 : vector<1x16x1xf32> to vector<16x1xf32>
    %109 = arith.mulf %106, %108 : vector<16x1xf32>
    %c1_i32_25 = arith.constant 1 : i32
    %110 = tpu.dynamic_rotate %106 by %c1_i32_25 dim 0 : vector<16x1xf32>, i32 -> vector<16x1xf32>
    %111 = vector.extract_strided_slice %4 {offsets = [0, 0, 0], sizes = [1, 16, 1], strides = [1, 1, 1]} : vector<3x16x1xf32> to vector<1x16x1xf32>
    %112 = vector.shape_cast %111 : vector<1x16x1xf32> to vector<16x1xf32>
    %113 = arith.mulf %110, %112 : vector<16x1xf32>
    %114 = arith.addf %109, %113 : vector<16x1xf32>
    %c15_i32_26 = arith.constant 15 : i32
    %115 = tpu.dynamic_rotate %106 by %c15_i32_26 dim 0 : vector<16x1xf32>, i32 -> vector<16x1xf32>
    %116 = vector.extract_strided_slice %4 {offsets = [2, 0, 0], sizes = [1, 16, 1], strides = [1, 1, 1]} : vector<3x16x1xf32> to vector<1x16x1xf32>
    %117 = vector.shape_cast %116 : vector<1x16x1xf32> to vector<16x1xf32>
    %118 = arith.mulf %115, %117 : vector<16x1xf32>
    %119 = arith.addf %114, %118 : vector<16x1xf32>
    %120 = arith.negf %119 : vector<16x1xf32>
    %121 = math.exp %120 : vector<16x1xf32>
    %cst_27 = arith.constant 1.000000e+00 : f32
    %122 = vector.broadcast %cst_27 : f32 to vector<16x1xf32>
    %123 = arith.addf %122, %121 : vector<16x1xf32>
    %124 = arith.divf %122, %123 : vector<16x1xf32>
    %125 = vector.broadcast %124 : vector<16x1xf32> to vector<16x256xf32>
    %126 = arith.mulf %102, %125 : vector<16x256xf32>
    %cst_28 = arith.constant dense<0.000000e+00> : vector<4x256xf32>
    %127 = tpu.matmul %5, %126, %cst_28 {dimension_numbers = #tpu.dot_dimension_numbers<[1], [0], [0], [1], [0, 0, 1, 1], [], []>} : vector<4x16xf32>, vector<16x256xf32>, vector<4x256xf32> -> vector<4x256xf32>
    %128 = vector.broadcast %6 : vector<4x1xf32> to vector<4x256xf32>
    %129 = arith.addf %127, %128 : vector<4x256xf32>
    %130 = arith.addf %129, %9 : vector<4x256xf32>
    %c0_29 = arith.constant 0 : index
    %c0_30 = arith.constant 0 : index
    %c0_31 = arith.constant 0 : index
    %131 = vector.load %arg10[%c0_29, %c0_30, %c0_31] : memref<2x4x256xf32, #tpu.memory_space<vmem>>, vector<1x4x256xf32>
    %132 = vector.shape_cast %131 : vector<1x4x256xf32> to vector<4x256xf32>
    %133 = vector.shape_cast %130 : vector<4x256xf32> to vector<1x4x256xf32>
    tpu.vector_store %arg10[%c0_29, %c0_30, %c0_31], %133 {strides = array<i32>} : memref<2x4x256xf32, #tpu.memory_space<vmem>>, vector<1x4x256xf32>,
    %c1 = arith.constant 1 : index
    %c0_32 = arith.constant 0 : index
    %c0_33 = arith.constant 0 : index
    %134 = vector.load %arg1[%c1, %c0_32, %c0_33] : memref<2x4x256xf32, #tpu.memory_space<vmem>>, vector<1x4x256xf32>
    %135 = vector.shape_cast %134 : vector<1x4x256xf32> to vector<4x256xf32>
    %cst_34 = arith.constant dense<0.000000e+00> : vector<16x256xf32>
    %136 = tpu.matmul %0, %135, %cst_34 {dimension_numbers = #tpu.dot_dimension_numbers<[1], [0], [0], [1], [0, 0, 1, 1], [], []>} : vector<16x4xf32>, vector<4x256xf32>, vector<16x256xf32> -> vector<16x256xf32>
    %137 = vector.broadcast %1 : vector<16x1xf32> to vector<16x256xf32>
    %138 = arith.addf %136, %137 : vector<16x256xf32>
    %cst_35 = arith.constant 0.000000e+00 : f32
    %cst_36 = arith.constant 6.000000e+00 : f32
    %139 = vector.broadcast %cst_35 : f32 to vector<16x256xf32>
    %140 = arith.maximumf %139, %138 : vector<16x256xf32>
    %141 = vector.broadcast %cst_36 : f32 to vector<16x256xf32>
    %142 = arith.minimumf %141, %140 : vector<16x256xf32>
    %143 = vector.extract_strided_slice %2 {offsets = [4, 0, 0], sizes = [1, 16, 1], strides = [1, 1, 1]} : vector<9x16x1xf32> to vector<1x16x1xf32>
    %144 = vector.shape_cast %143 : vector<1x16x1xf32> to vector<16x1xf32>
    %145 = vector.broadcast %144 : vector<16x1xf32> to vector<16x256xf32>
    %146 = arith.mulf %142, %145 : vector<16x256xf32>
    %c17_i32_37 = arith.constant 17 : i32
    %147 = tpu.dynamic_rotate %142 by %c17_i32_37 dim 1 : vector<16x256xf32>, i32 -> vector<16x256xf32>
    %148 = vector.extract_strided_slice %7 {offsets = [0, 0, 0], sizes = [1, 1, 256], strides = [1, 1, 1]} : vector<9x1x256xf32> to vector<1x1x256xf32>
    %149 = vector.shape_cast %148 : vector<1x1x256xf32> to vector<1x256xf32>
    %150 = vector.broadcast %149 : vector<1x256xf32> to vector<16x256xf32>
    %151 = arith.mulf %147, %150 : vector<16x256xf32>
    %152 = vector.extract_strided_slice %2 {offsets = [0, 0, 0], sizes = [1, 16, 1], strides = [1, 1, 1]} : vector<9x16x1xf32> to vector<1x16x1xf32>
    %153 = vector.shape_cast %152 : vector<1x16x1xf32> to vector<16x1xf32>
    %154 = vector.broadcast %153 : vector<16x1xf32> to vector<16x256xf32>
    %155 = arith.mulf %151, %154 : vector<16x256xf32>
    %156 = arith.addf %146, %155 : vector<16x256xf32>
    %c16_i32_38 = arith.constant 16 : i32
    %157 = tpu.dynamic_rotate %142 by %c16_i32_38 dim 1 : vector<16x256xf32>, i32 -> vector<16x256xf32>
    %158 = vector.extract_strided_slice %7 {offsets = [1, 0, 0], sizes = [1, 1, 256], strides = [1, 1, 1]} : vector<9x1x256xf32> to vector<1x1x256xf32>
    %159 = vector.shape_cast %158 : vector<1x1x256xf32> to vector<1x256xf32>
    %160 = vector.broadcast %159 : vector<1x256xf32> to vector<16x256xf32>
    %161 = arith.mulf %157, %160 : vector<16x256xf32>
    %162 = vector.extract_strided_slice %2 {offsets = [1, 0, 0], sizes = [1, 16, 1], strides = [1, 1, 1]} : vector<9x16x1xf32> to vector<1x16x1xf32>
    %163 = vector.shape_cast %162 : vector<1x16x1xf32> to vector<16x1xf32>
    %164 = vector.broadcast %163 : vector<16x1xf32> to vector<16x256xf32>
    %165 = arith.mulf %161, %164 : vector<16x256xf32>
    %166 = arith.addf %156, %165 : vector<16x256xf32>
    %c15_i32_39 = arith.constant 15 : i32
    %167 = tpu.dynamic_rotate %142 by %c15_i32_39 dim 1 : vector<16x256xf32>, i32 -> vector<16x256xf32>
    %168 = vector.extract_strided_slice %7 {offsets = [2, 0, 0], sizes = [1, 1, 256], strides = [1, 1, 1]} : vector<9x1x256xf32> to vector<1x1x256xf32>
    %169 = vector.shape_cast %168 : vector<1x1x256xf32> to vector<1x256xf32>
    %170 = vector.broadcast %169 : vector<1x256xf32> to vector<16x256xf32>
    %171 = arith.mulf %167, %170 : vector<16x256xf32>
    %172 = vector.extract_strided_slice %2 {offsets = [2, 0, 0], sizes = [1, 16, 1], strides = [1, 1, 1]} : vector<9x16x1xf32> to vector<1x16x1xf32>
    %173 = vector.shape_cast %172 : vector<1x16x1xf32> to vector<16x1xf32>
    %174 = vector.broadcast %173 : vector<16x1xf32> to vector<16x256xf32>
    %175 = arith.mulf %171, %174 : vector<16x256xf32>
    %176 = arith.addf %166, %175 : vector<16x256xf32>
    %c1_i32_40 = arith.constant 1 : i32
    %177 = tpu.dynamic_rotate %142 by %c1_i32_40 dim 1 : vector<16x256xf32>, i32 -> vector<16x256xf32>
    %178 = vector.extract_strided_slice %7 {offsets = [3, 0, 0], sizes = [1, 1, 256], strides = [1, 1, 1]} : vector<9x1x256xf32> to vector<1x1x256xf32>
    %179 = vector.shape_cast %178 : vector<1x1x256xf32> to vector<1x256xf32>
    %180 = vector.broadcast %179 : vector<1x256xf32> to vector<16x256xf32>
    %181 = arith.mulf %177, %180 : vector<16x256xf32>
    %182 = vector.extract_strided_slice %2 {offsets = [3, 0, 0], sizes = [1, 16, 1], strides = [1, 1, 1]} : vector<9x16x1xf32> to vector<1x16x1xf32>
    %183 = vector.shape_cast %182 : vector<1x16x1xf32> to vector<16x1xf32>
    %184 = vector.broadcast %183 : vector<16x1xf32> to vector<16x256xf32>
    %185 = arith.mulf %181, %184 : vector<16x256xf32>
    %186 = arith.addf %176, %185 : vector<16x256xf32>
    %c255_i32_41 = arith.constant 255 : i32
    %187 = tpu.dynamic_rotate %142 by %c255_i32_41 dim 1 : vector<16x256xf32>, i32 -> vector<16x256xf32>
    %188 = vector.extract_strided_slice %7 {offsets = [5, 0, 0], sizes = [1, 1, 256], strides = [1, 1, 1]} : vector<9x1x256xf32> to vector<1x1x256xf32>
    %189 = vector.shape_cast %188 : vector<1x1x256xf32> to vector<1x256xf32>
    %190 = vector.broadcast %189 : vector<1x256xf32> to vector<16x256xf32>
    %191 = arith.mulf %187, %190 : vector<16x256xf32>
    %192 = vector.extract_strided_slice %2 {offsets = [5, 0, 0], sizes = [1, 16, 1], strides = [1, 1, 1]} : vector<9x16x1xf32> to vector<1x16x1xf32>
    %193 = vector.shape_cast %192 : vector<1x16x1xf32> to vector<16x1xf32>
    %194 = vector.broadcast %193 : vector<16x1xf32> to vector<16x256xf32>
    %195 = arith.mulf %191, %194 : vector<16x256xf32>
    %196 = arith.addf %186, %195 : vector<16x256xf32>
    %c241_i32_42 = arith.constant 241 : i32
    %197 = tpu.dynamic_rotate %142 by %c241_i32_42 dim 1 : vector<16x256xf32>, i32 -> vector<16x256xf32>
    %198 = vector.extract_strided_slice %7 {offsets = [6, 0, 0], sizes = [1, 1, 256], strides = [1, 1, 1]} : vector<9x1x256xf32> to vector<1x1x256xf32>
    %199 = vector.shape_cast %198 : vector<1x1x256xf32> to vector<1x256xf32>
    %200 = vector.broadcast %199 : vector<1x256xf32> to vector<16x256xf32>
    %201 = arith.mulf %197, %200 : vector<16x256xf32>
    %202 = vector.extract_strided_slice %2 {offsets = [6, 0, 0], sizes = [1, 16, 1], strides = [1, 1, 1]} : vector<9x16x1xf32> to vector<1x16x1xf32>
    %203 = vector.shape_cast %202 : vector<1x16x1xf32> to vector<16x1xf32>
    %204 = vector.broadcast %203 : vector<16x1xf32> to vector<16x256xf32>
    %205 = arith.mulf %201, %204 : vector<16x256xf32>
    %206 = arith.addf %196, %205 : vector<16x256xf32>
    %c240_i32_43 = arith.constant 240 : i32
    %207 = tpu.dynamic_rotate %142 by %c240_i32_43 dim 1 : vector<16x256xf32>, i32 -> vector<16x256xf32>
    %208 = vector.extract_strided_slice %7 {offsets = [7, 0, 0], sizes = [1, 1, 256], strides = [1, 1, 1]} : vector<9x1x256xf32> to vector<1x1x256xf32>
    %209 = vector.shape_cast %208 : vector<1x1x256xf32> to vector<1x256xf32>
    %210 = vector.broadcast %209 : vector<1x256xf32> to vector<16x256xf32>
    %211 = arith.mulf %207, %210 : vector<16x256xf32>
    %212 = vector.extract_strided_slice %2 {offsets = [7, 0, 0], sizes = [1, 16, 1], strides = [1, 1, 1]} : vector<9x16x1xf32> to vector<1x16x1xf32>
    %213 = vector.shape_cast %212 : vector<1x16x1xf32> to vector<16x1xf32>
    %214 = vector.broadcast %213 : vector<16x1xf32> to vector<16x256xf32>
    %215 = arith.mulf %211, %214 : vector<16x256xf32>
    %216 = arith.addf %206, %215 : vector<16x256xf32>
    %c239_i32_44 = arith.constant 239 : i32
    %217 = tpu.dynamic_rotate %142 by %c239_i32_44 dim 1 : vector<16x256xf32>, i32 -> vector<16x256xf32>
    %218 = vector.extract_strided_slice %7 {offsets = [8, 0, 0], sizes = [1, 1, 256], strides = [1, 1, 1]} : vector<9x1x256xf32> to vector<1x1x256xf32>
    %219 = vector.shape_cast %218 : vector<1x1x256xf32> to vector<1x256xf32>
    %220 = vector.broadcast %219 : vector<1x256xf32> to vector<16x256xf32>
    %221 = arith.mulf %217, %220 : vector<16x256xf32>
    %222 = vector.extract_strided_slice %2 {offsets = [8, 0, 0], sizes = [1, 16, 1], strides = [1, 1, 1]} : vector<9x16x1xf32> to vector<1x16x1xf32>
    %223 = vector.shape_cast %222 : vector<1x16x1xf32> to vector<16x1xf32>
    %224 = vector.broadcast %223 : vector<16x1xf32> to vector<16x256xf32>
    %225 = arith.mulf %221, %224 : vector<16x256xf32>
    %226 = arith.addf %216, %225 : vector<16x256xf32>
    %227 = vector.broadcast %3 : vector<16x1xf32> to vector<16x256xf32>
    %228 = arith.addf %226, %227 : vector<16x256xf32>
    %cst_45 = arith.constant dense<0.000000e+00> : vector<16xf32>
    %229 = vector.multi_reduction <add>, %228, %cst_45 [1] : vector<16x256xf32> to vector<16xf32>
    %230 = vector.shape_cast %229 : vector<16xf32> to vector<16x1xf32>
    %cst_46 = arith.constant 3.906250e-03 : f32
    %231 = vector.broadcast %cst_46 : f32 to vector<16x1xf32>
    %232 = arith.mulf %230, %231 : vector<16x1xf32>
    %233 = vector.extract_strided_slice %4 {offsets = [1, 0, 0], sizes = [1, 16, 1], strides = [1, 1, 1]} : vector<3x16x1xf32> to vector<1x16x1xf32>
    %234 = vector.shape_cast %233 : vector<1x16x1xf32> to vector<16x1xf32>
    %235 = arith.mulf %232, %234 : vector<16x1xf32>
    %c1_i32_47 = arith.constant 1 : i32
    %236 = tpu.dynamic_rotate %232 by %c1_i32_47 dim 0 : vector<16x1xf32>, i32 -> vector<16x1xf32>
    %237 = vector.extract_strided_slice %4 {offsets = [0, 0, 0], sizes = [1, 16, 1], strides = [1, 1, 1]} : vector<3x16x1xf32> to vector<1x16x1xf32>
    %238 = vector.shape_cast %237 : vector<1x16x1xf32> to vector<16x1xf32>
    %239 = arith.mulf %236, %238 : vector<16x1xf32>
    %240 = arith.addf %235, %239 : vector<16x1xf32>
    %c15_i32_48 = arith.constant 15 : i32
    %241 = tpu.dynamic_rotate %232 by %c15_i32_48 dim 0 : vector<16x1xf32>, i32 -> vector<16x1xf32>
    %242 = vector.extract_strided_slice %4 {offsets = [2, 0, 0], sizes = [1, 16, 1], strides = [1, 1, 1]} : vector<3x16x1xf32> to vector<1x16x1xf32>
    %243 = vector.shape_cast %242 : vector<1x16x1xf32> to vector<16x1xf32>
    %244 = arith.mulf %241, %243 : vector<16x1xf32>
    %245 = arith.addf %240, %244 : vector<16x1xf32>
    %246 = arith.negf %245 : vector<16x1xf32>
    %247 = math.exp %246 : vector<16x1xf32>
    %cst_49 = arith.constant 1.000000e+00 : f32
    %248 = vector.broadcast %cst_49 : f32 to vector<16x1xf32>
    %249 = arith.addf %248, %247 : vector<16x1xf32>
    %250 = arith.divf %248, %249 : vector<16x1xf32>
    %251 = vector.broadcast %250 : vector<16x1xf32> to vector<16x256xf32>
    %252 = arith.mulf %228, %251 : vector<16x256xf32>
    %cst_50 = arith.constant dense<0.000000e+00> : vector<4x256xf32>
    %253 = tpu.matmul %5, %252, %cst_50 {dimension_numbers = #tpu.dot_dimension_numbers<[1], [0], [0], [1], [0, 0, 1, 1], [], []>} : vector<4x16xf32>, vector<16x256xf32>, vector<4x256xf32> -> vector<4x256xf32>
    %254 = vector.broadcast %6 : vector<4x1xf32> to vector<4x256xf32>
    %255 = arith.addf %253, %254 : vector<4x256xf32>
    %256 = arith.addf %255, %135 : vector<4x256xf32>
    %c1_51 = arith.constant 1 : index
    %c0_52 = arith.constant 0 : index
    %c0_53 = arith.constant 0 : index
    %257 = vector.load %arg10[%c1_51, %c0_52, %c0_53] : memref<2x4x256xf32, #tpu.memory_space<vmem>>, vector<1x4x256xf32>
    %258 = vector.shape_cast %257 : vector<1x4x256xf32> to vector<4x256xf32>
    %259 = vector.shape_cast %256 : vector<4x256xf32> to vector<1x4x256xf32>
    tpu.vector_store %arg10[%c1_51, %c0_52, %c0_53], %259 {strides = array<i32>} : memref<2x4x256xf32, #tpu.memory_space<vmem>>, vector<1x4x256xf32>,
    return
  }
  func.func @transform_0(%arg0: i32) -> (i32, i32, i32) {
    %c0_i32 = arith.constant 0 : i32
    %c0_i32_0 = arith.constant 0 : i32
    %c0_i32_1 = arith.constant 0 : i32
    return %arg0, %c0_i32, %c0_i32_0 : i32, i32, i32
  }
  func.func @transform_1(%arg0: i32) -> (i32, i32, i32) {
    %c0_i32 = arith.constant 0 : i32
    %c0_i32_0 = arith.constant 0 : i32
    %c0_i32_1 = arith.constant 0 : i32
    %c0_i32_2 = arith.constant 0 : i32
    return %c0_i32, %c0_i32_0, %c0_i32_1 : i32, i32, i32
  }
  func.func @transform_2(%arg0: i32) -> (i32, i32) {
    %c0_i32 = arith.constant 0 : i32
    %c0_i32_0 = arith.constant 0 : i32
    %c0_i32_1 = arith.constant 0 : i32
    return %c0_i32, %c0_i32_0 : i32, i32
  }
  func.func @transform_3(%arg0: i32) -> (i32, i32) {
    %c0_i32 = arith.constant 0 : i32
    %c0_i32_0 = arith.constant 0 : i32
    %c0_i32_1 = arith.constant 0 : i32
    return %c0_i32, %c0_i32_0 : i32, i32
  }
  func.func @transform_4(%arg0: i32) -> (i32, i32, i32) {
    %c0_i32 = arith.constant 0 : i32
    %c0_i32_0 = arith.constant 0 : i32
    %c0_i32_1 = arith.constant 0 : i32
    %c0_i32_2 = arith.constant 0 : i32
    return %c0_i32, %c0_i32_0, %c0_i32_1 : i32, i32, i32
  }
  func.func @transform_5(%arg0: i32) -> (i32, i32) {
    %c0_i32 = arith.constant 0 : i32
    %c0_i32_0 = arith.constant 0 : i32
    %c0_i32_1 = arith.constant 0 : i32
    return %c0_i32, %c0_i32_0 : i32, i32
  }
  func.func @transform_6(%arg0: i32) -> (i32, i32, i32) {
    %c0_i32 = arith.constant 0 : i32
    %c0_i32_0 = arith.constant 0 : i32
    %c0_i32_1 = arith.constant 0 : i32
    %c0_i32_2 = arith.constant 0 : i32
    return %c0_i32, %c0_i32_0, %c0_i32_1 : i32, i32, i32
  }
  func.func @transform_7(%arg0: i32) -> (i32, i32) {
    %c0_i32 = arith.constant 0 : i32
    %c0_i32_0 = arith.constant 0 : i32
    %c0_i32_1 = arith.constant 0 : i32
    return %c0_i32, %c0_i32_0 : i32, i32
  }
  func.func @transform_8(%arg0: i32) -> (i32, i32) {
    %c0_i32 = arith.constant 0 : i32
    %c0_i32_0 = arith.constant 0 : i32
    %c0_i32_1 = arith.constant 0 : i32
    return %c0_i32, %c0_i32_0 : i32, i32
  }
  func.func @transform_9(%arg0: i32) -> (i32, i32, i32) {
    %c0_i32 = arith.constant 0 : i32
    %c0_i32_0 = arith.constant 0 : i32
    %c0_i32_1 = arith.constant 0 : i32
    return %arg0, %c0_i32, %c0_i32_0 : i32, i32, i32
  }
}

</mosaic_0001>

<llo_original>
// kernel: tpu_custom_call.1
$region0: #{tpu_custom_call.1}
  #allocation0 [shape = 'u32[]', space=smem, size = 0x4, offset = 0x4, fixed_abs, tag = 'smem constant byte address 0x4 - core index']
  #allocation1 [shape = 'u32[144,128]{1,0:T(1,128)}', space=vmem, size = 0x12000, scoped, tag = 'internal scratch']
  %s0 = inlined_call_operand.vmem [shape: f32[2,4,256], index: 0, kind: input, shape index: {}]
  %s1 = inlined_call_operand.vmem [shape: f32[9,1,256], index: 1, kind: input, shape index: {}]
  %s2 = inlined_call_operand.vmem [shape: f32[16,4], index: 2, kind: input, shape index: {}]
  %s3 = inlined_call_operand.vmem [shape: f32[16,1], index: 3, kind: input, shape index: {}]
  %s4 = inlined_call_operand.vmem [shape: f32[9,16,1], index: 4, kind: input, shape index: {}]
  %s5 = inlined_call_operand.vmem [shape: f32[16,1], index: 5, kind: input, shape index: {}]
  %s6 = inlined_call_operand.vmem [shape: f32[3,16,1], index: 6, kind: input, shape index: {}]
  %s7 = inlined_call_operand.vmem [shape: f32[4,16], index: 7, kind: input, shape index: {}]
  %s8 = inlined_call_operand.vmem [shape: f32[4,1], index: 8, kind: input, shape index: {}]
  %s9 = inlined_call_operand.hbm [shape: f32[2,4,256], index: 9, kind: output, shape index: {}]
  %s10 = sld [smem:[#allocation0]]
  $region46: #{tpu_custom_call.1} parent=0
    _
  %s12 = ssub.s32 1, %s10
  %s13 = scalar_select 0, %s12, %s10
  $region1: #{tpu_custom_call.1} parent=0
    #allocation2 [shape = 'u8[8192]{0}', space=vmem, size = 0x2000, scoped, tag = 'output window, operand 0, single buffered']
    #allocation3 [shape = 's32[1]{0}', space=sflag, size = 0x4, scoped, tag = 'scoped memory for tpu_custom_call.1']
    %14 = vsyncpa [#allocation3], 0
    // Predicated region
    $region2: #{tpu_custom_call.1} parent=1 // pred_check
      _
    $region3: #{tpu_custom_call.1} parent=1 // pred_check_branch
      %16 = sbr.rel (0) target = $region5
    $region4: #{tpu_custom_call.1} parent=1 // pred_region
      _
    $region5: #{tpu_custom_call.1} parent=1 // pred_fallthru
      _
    // Predicated region
    $region6: #{tpu_custom_call.1} parent=1 // pred_check
      _
    $region7: #{tpu_custom_call.1} parent=1 // pred_check_branch
      %18 = sbr.rel (0) target = $region9
    $region8: #{tpu_custom_call.1} parent=1 // pred_region
      _
    $region9: #{tpu_custom_call.1} parent=1 // pred_fallthru
      _
    // Predicated region
    $region10: #{tpu_custom_call.1} parent=1 // pred_check
      _
    $region11: #{tpu_custom_call.1} parent=1 // pred_check_branch
      %20 = sbr.rel (0) target = $region13
    $region12: #{tpu_custom_call.1} parent=1 // pred_region
      _
    $region13: #{tpu_custom_call.1} parent=1 // pred_fallthru
      _
    // Predicated region
    $region14: #{tpu_custom_call.1} parent=1 // pred_check
      _
    $region15: #{tpu_custom_call.1} parent=1 // pred_check_branch
      %22 = sbr.rel (0) target = $region17
    $region16: #{tpu_custom_call.1} parent=1 // pred_region
      _
    $region17: #{tpu_custom_call.1} parent=1 // pred_fallthru
      _
    // Predicated region
    $region18: #{tpu_custom_call.1} parent=1 // pred_check
      _
    $region19: #{tpu_custom_call.1} parent=1 // pred_check_branch
      %24 = sbr.rel (0) target = $region21
    $region20: #{tpu_custom_call.1} parent=1 // pred_region
      _
    $region21: #{tpu_custom_call.1} parent=1 // pred_fallthru
      _
    // Predicated region
    $region22: #{tpu_custom_call.1} parent=1 // pred_check
      _
    $region23: #{tpu_custom_call.1} parent=1 // pred_check_branch
      %26 = sbr.rel (0) target = $region25
    $region24: #{tpu_custom_call.1} parent=1 // pred_region
      _
    $region25: #{tpu_custom_call.1} parent=1 // pred_fallthru
      _
    // Predicated region
    $region26: #{tpu_custom_call.1} parent=1 // pred_check
      _
    $region27: #{tpu_custom_call.1} parent=1 // pred_check_branch
      %28 = sbr.rel (0) target = $region29
    $region28: #{tpu_custom_call.1} parent=1 // pred_region
      _
    $region29: #{tpu_custom_call.1} parent=1 // pred_fallthru
      _
    // Predicated region
    $region30: #{tpu_custom_call.1} parent=1 // pred_check
      _
    $region31: #{tpu_custom_call.1} parent=1 // pred_check_branch
      %30 = sbr.rel (0) target = $region33
    $region32: #{tpu_custom_call.1} parent=1 // pred_region
      _
    $region33: #{tpu_custom_call.1} parent=1 // pred_fallthru
      _
    // Predicated region
    $region34: #{tpu_custom_call.1} parent=1 // pred_check
      _
    $region35: #{tpu_custom_call.1} parent=1 // pred_check_branch
      %32 = sbr.rel (0) target = $region37
    $region36: #{tpu_custom_call.1} parent=1 // pred_region
      _
    $region37: #{tpu_custom_call.1} parent=1 // pred_fallthru
      _
    %v33 = vld [vmem:[%s2] sm:$0xff]
    %v34 = vld [vmem:[%s2 + $0x8] sm:$0xff]
    %v35 = vld [vmem:[%s3] sm:$0xff]
    %v36 = vld [vmem:[%s3 + $0x8] sm:$0xff]
    %v37 = vld [vmem:[%s4] sm:$0xff]
    %v38 = vld [vmem:[%s4 + $0x8] sm:$0xff]
    %v39 = vld [vmem:[%s4 + $0x10] sm:$0xff]
    %v40 = vld [vmem:[%s4 + $0x18] sm:$0xff]
    %v41 = vld [vmem:[%s4 + $0x20] sm:$0xff]
    %v42 = vld [vmem:[%s4 + $0x28] sm:$0xff]
    %v43 = vld [vmem:[%s4 + $0x30] sm:$0xff]
    %v44 = vld [vmem:[%s4 + $0x38] sm:$0xff]
    %v45 = vld [vmem:[%s4 + $0x40] sm:$0xff]
    %v46 = vld [vmem:[%s4 + $0x48] sm:$0xff]
    %v47 = vld [vmem:[%s4 + $0x50] sm:$0xff]
    %v48 = vld [vmem:[%s4 + $0x58] sm:$0xff]
    %v49 = vld [vmem:[%s4 + $0x60] sm:$0xff]
    %v50 = vld [vmem:[%s4 + $0x68] sm:$0xff]
    %v51 = vld [vmem:[%s4 + $0x70] sm:$0xff]
    %v52 = vld [vmem:[%s4 + $0x78] sm:$0xff]
    %v53 = vld [vmem:[%s4 + $0x80] sm:$0xff]
    %v54 = vld [vmem:[%s4 + $0x88] sm:$0xff]
    %v55 = vld [vmem:[%s5] sm:$0xff]
    %v56 = vld [vmem:[%s5 + $0x8] sm:$0xff]
    %v57 = vld [vmem:[%s6] sm:$0xff]
    %v58 = vld [vmem:[%s6 + $0x8] sm:$0xff]
    %v59 = vld [vmem:[%s6 + $0x10] sm:$0xff]
    %v60 = vld [vmem:[%s6 + $0x18] sm:$0xff]
    %v61 = vld [vmem:[%s6 + $0x20] sm:$0xff]
    %v62 = vld [vmem:[%s6 + $0x28] sm:$0xff]
    %v63 = vld [vmem:[%s7] sm:$0xf]
    %v64 = vld [vmem:[%s8] sm:$0xf]
    %v65 = vld [vmem:[%s1] sm:$0x3]
    %v66 = vld [vmem:[%s1 + $0x2] sm:$0x3]
    %v67 = vld [vmem:[%s1 + $0x4] sm:$0x3]
    %v68 = vld [vmem:[%s1 + $0x6] sm:$0x3]
    %v69 = vld [vmem:[%s1 + $0xa] sm:$0x3]
    %v70 = vld [vmem:[%s1 + $0xc] sm:$0x3]
    %v71 = vld [vmem:[%s1 + $0xe] sm:$0x3]
    %v72 = vld [vmem:[%s1 + $0x10] sm:$0x3]
    %v73 = vld [vmem:[%s0] sm:$0xff]
    %75 = vset.pattern.permute.xlu0 0
    %76 = vperm.xlu0 %75, %v35
    %v77 = vpop.permute.xlu0 %76
    %80 = vset.pattern.permute.xlu0 0
    %81 = vperm.xlu0 %80, %v36
    %v82 = vpop.permute.xlu0 %81
    %v85 = vcombine.high %v73, %v73
    %vm86 = vcmask 31744
    %v88 = vsel %vm86, %v33, 0
    %v91 = vsel %vm86, %v34, 0
    %vm93 = vcmask 1043456
    %v94 = vsel %vm93, %v73, 0
    %v96 = vsel %vm93, %v85, 0
    %98 = vmatprep.subr.mxu0 %v96
    %99 = vmatpush1.msra.mxu0 %v94
    %100 = vmatprep.subr.mxu0 0.0
    %101 = vmatpush1.msra.mxu0 0.0
    %102 = vmatprep.subr.mxu0 0.0
    %103 = vmatpush1.msra.mxu0 0.0
    %104 = vmatprep.subr.mxu0 0.0
    %105 = vmatpush1.msra.mxu0 0.0
    %106 = vmatprep.subr.mxu0 0.0
    %107 = vmatpush1.msra.mxu0 0.0
    %108 = vmatprep.subr.mxu0 0.0
    %109 = vmatpush1.msra.mxu0 0.0
    %110 = vmatprep.subr.mxu0 0.0
    %111 = vmatpush1.msra.mxu0 0.0
    %112 = vmatprep.subr.mxu0 0.0
    %113 = vmatpush1.msra.mxu0 0.0
    %114 = vmatprep.subr.mxu0 0.0
    %115 = vmatpush1.msra.mxu0 0.0
    %116 = vmatprep.subr.mxu0 0.0
    %117 = vmatpush1.msra.mxu0 0.0
    %118 = vmatprep.subr.mxu0 0.0
    %119 = vmatpush1.msra.mxu0 0.0
    %120 = vmatprep.subr.mxu0 0.0
    %121 = vmatpush1.msra.mxu0 0.0
    %122 = vmatprep.subr.mxu0 0.0
    %123 = vmatpush1.msra.mxu0 0.0
    %124 = vmatprep.subr.mxu0 0.0
    %125 = vmatpush1.msra.mxu0 0.0
    %126 = vmatprep.subr.mxu0 0.0
    %127 = vmatpush1.msra.mxu0 0.0
    %128 = vmatprep.subr.mxu0 0.0
    %129 = vmatpush1.msra.mxu0 0.0
    %130 = vmatprep.subr.mxu0 0.0
    %131 = vmatpush1.msra.mxu0 0.0
    %132 = vmatprep.subr.mxu0 0.0
    %133 = vmatpush1.msra.mxu0 0.0
    %134 = vmatprep.subr.mxu0 0.0
    %135 = vmatpush1.msra.mxu0 0.0
    %136 = vmatprep.subr.mxu0 0.0
    %137 = vmatpush1.msra.mxu0 0.0
    %138 = vmatprep.subr.mxu0 0.0
    %139 = vmatpush1.msra.mxu0 0.0
    %140 = vmatprep.subr.mxu0 0.0
    %141 = vmatpush1.msra.mxu0 0.0
    %142 = vmatprep.subr.mxu0 0.0
    %143 = vmatpush1.msra.mxu0 0.0
    %144 = vmatprep.subr.mxu0 0.0
    %145 = vmatpush1.msra.mxu0 0.0
    %146 = vmatprep.subr.mxu0 0.0
    %147 = vmatpush1.msra.mxu0 0.0
    %148 = vmatprep.subr.mxu0 0.0
    %149 = vmatpush1.msra.mxu0 0.0
    %150 = vmatprep.subr.mxu0 0.0
    %151 = vmatpush1.msra.mxu0 0.0
    %152 = vmatprep.subr.mxu0 0.0
    %153 = vmatpush1.msra.mxu0 0.0
    %154 = vmatprep.subr.mxu0 0.0
    %155 = vmatpush1.msra.mxu0 0.0
    %156 = vmatprep.subr.mxu0 0.0
    %157 = vmatpush1.msra.mxu0 0.0
    %158 = vmatprep.subr.mxu0 0.0
    %159 = vmatpush1.msra.mxu0 0.0
    %160 = vmatprep.subr.mxu0 0.0
    %161 = vmatpush1.msra.mxu0 0.0
    %162 = vmatprep.mubr.f32.mxu0 0.0
    %163 = vmatmul.mubr.f32.gmra.mrb[0].mxu0 %v88
    %v164 = vpop.f32.mrb[0].mxu0
    %v165 = vadd.f32 %v77, %v164
    %v166 = vpop.f32.mrb[0].mxu0
    %v167 = vadd.f32 %v77, %v166
    %168 = vmatprep.mubr.f32.mxu0 0.0
    %169 = vmatmul.mubr.f32.gmra.mrb[0].mxu0 %v91
    %v170 = vpop.f32.mrb[0].mxu0
    %v171 = vadd.f32 %v82, %v170
    %v172 = vpop.f32.mrb[0].mxu0
    %v173 = vadd.f32 %v82, %v172
    %174 = vdwg.mxu0
    %v175 = vmax.f32 %v165, 0.0
    %v176 = vmax.f32 %v167, 0.0
    %v177 = vmax.f32 %v171, 0.0
    %v178 = vmax.f32 %v173, 0.0
    %v179 = vmin.f32 %v175, 6.0
    %v180 = vmin.f32 %v176, 6.0
    %v181 = vmin.f32 %v177, 6.0
    %v182 = vmin.f32 %v178, 6.0
    %184 = vset.pattern.permute.xlu0 0
    %185 = vperm.xlu0 %184, %v45
    %v186 = vpop.permute.xlu0 %185
    %189 = vset.pattern.permute.xlu0 0
    %190 = vperm.xlu0 %189, %v46
    %v191 = vpop.permute.xlu0 %190
    %v193 = vmul.f32 %v179, %v186
    %v194 = vmul.f32 %v180, %v186
    %v195 = vmul.f32 %v181, %v191
    %v196 = vmul.f32 %v182, %v191
    %197 = vrot.lane.b32.xlu0 %v179, 17
    %v198 = vpop.permute.xlu0 %197
    %199 = vrot.lane.b32.xlu0 %v181, 17
    %v200 = vpop.permute.xlu0 %199
    %201 = vrot.lane.b32.xlu0 %v180, 17
    %v202 = vpop.permute.xlu0 %201
    %203 = vrot.lane.b32.xlu0 %v182, 17
    %v204 = vpop.permute.xlu0 %203
    %v205 = vlaneseq
    %v206 = vand.u32 %v205, 127
    %vm207 = vcmp.lt.s32.totalorder %v206, 17
    %v208 = vsel %vm207, %v198, %v202
    %v209 = vsel %vm207, %v200, %v204
    %v210 = vsel %vm207, %v202, %v198
    %v211 = vsel %vm207, %v204, %v200
    %v213 = vlaneseq
    %v214 = vshrl.u32 %v213, 7
    %v215 = vsub.s32 0, %v214
    %v216 = vrot.slane %v65, %v215
    %v217 = vlaneseq
    %v218 = vshrl.u32 %v217, 7
    %v219 = vsub.s32 1, %v218
    %v220 = vrot.slane %v65, %v219
    %v223 = vmul.f32 %v210, %v216
    %v224 = vmul.f32 %v208, %v220
    %v225 = vmul.f32 %v211, %v216
    %v226 = vmul.f32 %v209, %v220
    %228 = vset.pattern.permute.xlu0 0
    %229 = vperm.xlu0 %228, %v37
    %v230 = vpop.permute.xlu0 %229
    %233 = vset.pattern.permute.xlu0 0
    %234 = vperm.xlu0 %233, %v38
    %v235 = vpop.permute.xlu0 %234
    %v237 = vmul.f32 %v223, %v230
    %v238 = vmul.f32 %v224, %v230
    %v239 = vmul.f32 %v225, %v235
    %v240 = vmul.f32 %v226, %v235
    %v241 = vadd.f32 %v193, %v237
    %v242 = vadd.f32 %v194, %v238
    %v243 = vadd.f32 %v195, %v239
    %v244 = vadd.f32 %v196, %v240
    %245 = vrot.lane.b32.xlu0 %v179, 16
    %v246 = vpop.permute.xlu0 %245
    %247 = vrot.lane.b32.xlu0 %v181, 16
    %v248 = vpop.permute.xlu0 %247
    %249 = vrot.lane.b32.xlu0 %v180, 16
    %v250 = vpop.permute.xlu0 %249
    %251 = vrot.lane.b32.xlu0 %v182, 16
    %v252 = vpop.permute.xlu0 %251
    %vm253 = vcmp.lt.s32.totalorder %v206, 16
    %v254 = vsel %vm253, %v246, %v250
    %v255 = vsel %vm253, %v248, %v252
    %v256 = vsel %vm253, %v250, %v246
    %v257 = vsel %vm253, %v252, %v248
    %v259 = vlaneseq
    %v260 = vshrl.u32 %v259, 7
    %v261 = vsub.s32 0, %v260
    %v262 = vrot.slane %v66, %v261
    %v263 = vlaneseq
    %v264 = vshrl.u32 %v263, 7
    %v265 = vsub.s32 1, %v264
    %v266 = vrot.slane %v66, %v265
    %v269 = vmul.f32 %v256, %v262
    %v270 = vmul.f32 %v254, %v266
    %v271 = vmul.f32 %v257, %v262
    %v272 = vmul.f32 %v255, %v266
    %274 = vset.pattern.permute.xlu0 0
    %275 = vperm.xlu0 %274, %v39
    %v276 = vpop.permute.xlu0 %275
    %279 = vset.pattern.permute.xlu0 0
    %280 = vperm.xlu0 %279, %v40
    %v281 = vpop.permute.xlu0 %280
    %v283 = vmul.f32 %v269, %v276
    %v284 = vmul.f32 %v270, %v276
    %v285 = vmul.f32 %v271, %v281
    %v286 = vmul.f32 %v272, %v281
    %v287 = vadd.f32 %v241, %v283
    %v288 = vadd.f32 %v242, %v284
    %v289 = vadd.f32 %v243, %v285
    %v290 = vadd.f32 %v244, %v286
    %291 = vrot.lane.b32.xlu0 %v179, 15
    %v292 = vpop.permute.xlu0 %291
    %293 = vrot.lane.b32.xlu0 %v181, 15
    %v294 = vpop.permute.xlu0 %293
    %295 = vrot.lane.b32.xlu0 %v180, 15
    %v296 = vpop.permute.xlu0 %295
    %297 = vrot.lane.b32.xlu0 %v182, 15
    %v298 = vpop.permute.xlu0 %297
    %vm299 = vcmp.lt.s32.totalorder %v206, 15
    %v300 = vsel %vm299, %v292, %v296
    %v301 = vsel %vm299, %v294, %v298
    %v302 = vsel %vm299, %v296, %v292
    %v303 = vsel %vm299, %v298, %v294
    %v305 = vlaneseq
    %v306 = vshrl.u32 %v305, 7
    %v307 = vsub.s32 0, %v306
    %v308 = vrot.slane %v67, %v307
    %v309 = vlaneseq
    %v310 = vshrl.u32 %v309, 7
    %v311 = vsub.s32 1, %v310
    %v312 = vrot.slane %v67, %v311
    %v315 = vmul.f32 %v302, %v308
    %v316 = vmul.f32 %v300, %v312
    %v317 = vmul.f32 %v303, %v308
    %v318 = vmul.f32 %v301, %v312
    %320 = vset.pattern.permute.xlu0 0
    %321 = vperm.xlu0 %320, %v41
    %v322 = vpop.permute.xlu0 %321
    %325 = vset.pattern.permute.xlu0 0
    %326 = vperm.xlu0 %325, %v42
    %v327 = vpop.permute.xlu0 %326
    %v329 = vmul.f32 %v315, %v322
    %v330 = vmul.f32 %v316, %v322
    %v331 = vmul.f32 %v317, %v327
    %v332 = vmul.f32 %v318, %v327
    %v333 = vadd.f32 %v287, %v329
    %v334 = vadd.f32 %v288, %v330
    %v335 = vadd.f32 %v289, %v331
    %v336 = vadd.f32 %v290, %v332
    %337 = vrot.lane.b32.xlu0 %v179, 1
    %v338 = vpop.permute.xlu0 %337
    %339 = vrot.lane.b32.xlu0 %v181, 1
    %v340 = vpop.permute.xlu0 %339
    %341 = vrot.lane.b32.xlu0 %v180, 1
    %v342 = vpop.permute.xlu0 %341
    %343 = vrot.lane.b32.xlu0 %v182, 1
    %v344 = vpop.permute.xlu0 %343
    %vm345 = vcmp.lt.s32.totalorder %v206, 1
    %v346 = vsel %vm345, %v338, %v342
    %v347 = vsel %vm345, %v340, %v344
    %v348 = vsel %vm345, %v342, %v338
    %v349 = vsel %vm345, %v344, %v340
    %v351 = vlaneseq
    %v352 = vshrl.u32 %v351, 7
    %v353 = vsub.s32 0, %v352
    %v354 = vrot.slane %v68, %v353
    %v355 = vlaneseq
    %v356 = vshrl.u32 %v355, 7
    %v357 = vsub.s32 1, %v356
    %v358 = vrot.slane %v68, %v357
    %v361 = vmul.f32 %v348, %v354
    %v362 = vmul.f32 %v346, %v358
    %v363 = vmul.f32 %v349, %v354
    %v364 = vmul.f32 %v347, %v358
    %366 = vset.pattern.permute.xlu0 0
    %367 = vperm.xlu0 %366, %v43
    %v368 = vpop.permute.xlu0 %367
    %371 = vset.pattern.permute.xlu0 0
    %372 = vperm.xlu0 %371, %v44
    %v373 = vpop.permute.xlu0 %372
    %v375 = vmul.f32 %v361, %v368
    %v376 = vmul.f32 %v362, %v368
    %v377 = vmul.f32 %v363, %v373
    %v378 = vmul.f32 %v364, %v373
    %v379 = vadd.f32 %v333, %v375
    %v380 = vadd.f32 %v334, %v376
    %v381 = vadd.f32 %v335, %v377
    %v382 = vadd.f32 %v336, %v378
    %383 = vrot.lane.b32.xlu0 %v179, 127
    %v384 = vpop.permute.xlu0 %383
    %385 = vrot.lane.b32.xlu0 %v181, 127
    %v386 = vpop.permute.xlu0 %385
    %387 = vrot.lane.b32.xlu0 %v180, 127
    %v388 = vpop.permute.xlu0 %387
    %389 = vrot.lane.b32.xlu0 %v182, 127
    %v390 = vpop.permute.xlu0 %389
    %vm391 = vcmp.lt.s32.totalorder %v206, 127
    %v392 = vsel %vm391, %v384, %v388
    %v393 = vsel %vm391, %v386, %v390
    %v394 = vsel %vm391, %v388, %v384
    %v395 = vsel %vm391, %v390, %v386
    %v397 = vlaneseq
    %v398 = vshrl.u32 %v397, 7
    %v399 = vsub.s32 0, %v398
    %v400 = vrot.slane %v69, %v399
    %v401 = vlaneseq
    %v402 = vshrl.u32 %v401, 7
    %v403 = vsub.s32 1, %v402
    %v404 = vrot.slane %v69, %v403
    %v407 = vmul.f32 %v392, %v400
    %v408 = vmul.f32 %v394, %v404
    %v409 = vmul.f32 %v393, %v400
    %v410 = vmul.f32 %v395, %v404
    %412 = vset.pattern.permute.xlu0 0
    %413 = vperm.xlu0 %412, %v47
    %v414 = vpop.permute.xlu0 %413
    %417 = vset.pattern.permute.xlu0 0
    %418 = vperm.xlu0 %417, %v48
    %v419 = vpop.permute.xlu0 %418
    %v421 = vmul.f32 %v407, %v414
    %v422 = vmul.f32 %v408, %v414
    %v423 = vmul.f32 %v409, %v419
    %v424 = vmul.f32 %v410, %v419
    %v425 = vadd.f32 %v379, %v421
    %v426 = vadd.f32 %v380, %v422
    %v427 = vadd.f32 %v381, %v423
    %v428 = vadd.f32 %v382, %v424
    %429 = vrot.lane.b32.xlu0 %v179, 113
    %v430 = vpop.permute.xlu0 %429
    %431 = vrot.lane.b32.xlu0 %v181, 113
    %v432 = vpop.permute.xlu0 %431
    %433 = vrot.lane.b32.xlu0 %v180, 113
    %v434 = vpop.permute.xlu0 %433
    %435 = vrot.lane.b32.xlu0 %v182, 113
    %v436 = vpop.permute.xlu0 %435
    %vm437 = vcmp.lt.s32.totalorder %v206, 113
    %v438 = vsel %vm437, %v430, %v434
    %v439 = vsel %vm437, %v432, %v436
    %v440 = vsel %vm437, %v434, %v430
    %v441 = vsel %vm437, %v436, %v432
    %v443 = vlaneseq
    %v444 = vshrl.u32 %v443, 7
    %v445 = vsub.s32 0, %v444
    %v446 = vrot.slane %v70, %v445
    %v447 = vlaneseq
    %v448 = vshrl.u32 %v447, 7
    %v449 = vsub.s32 1, %v448
    %v450 = vrot.slane %v70, %v449
    %v453 = vmul.f32 %v438, %v446
    %v454 = vmul.f32 %v440, %v450
    %v455 = vmul.f32 %v439, %v446
    %v456 = vmul.f32 %v441, %v450
    %458 = vset.pattern.permute.xlu0 0
    %459 = vperm.xlu0 %458, %v49
    %v460 = vpop.permute.xlu0 %459
    %463 = vset.pattern.permute.xlu0 0
    %464 = vperm.xlu0 %463, %v50
    %v465 = vpop.permute.xlu0 %464
    %v467 = vmul.f32 %v453, %v460
    %v468 = vmul.f32 %v454, %v460
    %v469 = vmul.f32 %v455, %v465
    %v470 = vmul.f32 %v456, %v465
    %v471 = vadd.f32 %v425, %v467
    %v472 = vadd.f32 %v426, %v468
    %v473 = vadd.f32 %v427, %v469
    %v474 = vadd.f32 %v428, %v470
    %475 = vrot.lane.b32.xlu0 %v179, 112
    %v476 = vpop.permute.xlu0 %475
    %477 = vrot.lane.b32.xlu0 %v181, 112
    %v478 = vpop.permute.xlu0 %477
    %479 = vrot.lane.b32.xlu0 %v180, 112
    %v480 = vpop.permute.xlu0 %479
    %481 = vrot.lane.b32.xlu0 %v182, 112
    %v482 = vpop.permute.xlu0 %481
    %vm483 = vcmp.lt.s32.totalorder %v206, 112
    %v484 = vsel %vm483, %v476, %v480
    %v485 = vsel %vm483, %v478, %v482
    %v486 = vsel %vm483, %v480, %v476
    %v487 = vsel %vm483, %v482, %v478
    %v489 = vlaneseq
    %v490 = vshrl.u32 %v489, 7
    %v491 = vsub.s32 0, %v490
    %v492 = vrot.slane %v71, %v491
    %v493 = vlaneseq
    %v494 = vshrl.u32 %v493, 7
    %v495 = vsub.s32 1, %v494
    %v496 = vrot.slane %v71, %v495
    %v499 = vmul.f32 %v484, %v492
    %v500 = vmul.f32 %v486, %v496
    %v501 = vmul.f32 %v485, %v492
    %v502 = vmul.f32 %v487, %v496
    %504 = vset.pattern.permute.xlu0 0
    %505 = vperm.xlu0 %504, %v51
    %v506 = vpop.permute.xlu0 %505
    %509 = vset.pattern.permute.xlu0 0
    %510 = vperm.xlu0 %509, %v52
    %v511 = vpop.permute.xlu0 %510
    %v513 = vmul.f32 %v499, %v506
    %v514 = vmul.f32 %v500, %v506
    %v515 = vmul.f32 %v501, %v511
    %v516 = vmul.f32 %v502, %v511
    %v517 = vadd.f32 %v471, %v513
    %v518 = vadd.f32 %v472, %v514
    %v519 = vadd.f32 %v473, %v515
    %v520 = vadd.f32 %v474, %v516
    %521 = vrot.lane.b32.xlu0 %v179, 111
    %v522 = vpop.permute.xlu0 %521
    %523 = vrot.lane.b32.xlu0 %v181, 111
    %v524 = vpop.permute.xlu0 %523
    %525 = vrot.lane.b32.xlu0 %v180, 111
    %v526 = vpop.permute.xlu0 %525
    %527 = vrot.lane.b32.xlu0 %v182, 111
    %v528 = vpop.permute.xlu0 %527
    %vm529 = vcmp.lt.s32.totalorder %v206, 111
    %v530 = vsel %vm529, %v522, %v526
    %v531 = vsel %vm529, %v524, %v528
    %v532 = vsel %vm529, %v526, %v522
    %v533 = vsel %vm529, %v528, %v524
    %v535 = vlaneseq
    %v536 = vshrl.u32 %v535, 7
    %v537 = vsub.s32 0, %v536
    %v538 = vrot.slane %v72, %v537
    %v539 = vlaneseq
    %v540 = vshrl.u32 %v539, 7
    %v541 = vsub.s32 1, %v540
    %v542 = vrot.slane %v72, %v541
    %v545 = vmul.f32 %v530, %v538
    %v546 = vmul.f32 %v532, %v542
    %v547 = vmul.f32 %v531, %v538
    %v548 = vmul.f32 %v533, %v542
    %550 = vset.pattern.permute.xlu0 0
    %551 = vperm.xlu0 %550, %v53
    %v552 = vpop.permute.xlu0 %551
    %555 = vset.pattern.permute.xlu0 0
    %556 = vperm.xlu0 %555, %v54
    %v557 = vpop.permute.xlu0 %556
    %v559 = vmul.f32 %v545, %v552
    %v560 = vmul.f32 %v546, %v552
    %v561 = vmul.f32 %v547, %v557
    %v562 = vmul.f32 %v548, %v557
    %v563 = vadd.f32 %v517, %v559
    %v564 = vadd.f32 %v518, %v560
    %v565 = vadd.f32 %v519, %v561
    %v566 = vadd.f32 %v520, %v562
    %568 = vset.pattern.permute.xlu0 0
    %569 = vperm.xlu0 %568, %v55
    %v570 = vpop.permute.xlu0 %569
    %573 = vset.pattern.permute.xlu0 0
    %574 = vperm.xlu0 %573, %v56
    %v575 = vpop.permute.xlu0 %574
    %v577 = vadd.f32 %v563, %v570
    %v578 = vadd.f32 %v564, %v570
    %v579 = vadd.f32 %v565, %v575
    %v580 = vadd.f32 %v566, %v575
    %v581 = vadd.f32 %v577, %v578
    %582 = vadd.xlane.f32.xlu0 %v581
    %v583 = vpop.xlane.xlu0 %582
    %v584 = vadd.f32 %v579, %v580
    %585 = vadd.xlane.f32.xlu0 %v584
    %v586 = vpop.xlane.xlu0 %585
    %v587 = vmul.f32 %v583, 0.00390625
    %v588 = vmul.f32 %v586, 0.00390625
    %v589 = vmul.f32 %v587, %v59
    %v590 = vmul.f32 %v588, %v60
    %v591 = vrot.slane %v587, 7
    %v592 = vrot.slane %v588, 7
    %v593 = vlaneseq
    %v594 = vshrl.u32 %v593, 7
    %vm595 = vcmp.lt.s32.totalorder %v594, 1
    %v596 = vsel %vm595, %v591, %v592
    %v597 = vsel %vm595, %v592, %v591
    %v598 = vmul.f32 %v597, %v57
    %v599 = vmul.f32 %v596, %v58
    %v600 = vadd.f32 %v589, %v598
    %v601 = vadd.f32 %v590, %v599
    %v602 = vrot.slane %v587, 1
    %v603 = vrot.slane %v588, 1
    %vm604 = vcmp.lt.s32.totalorder %v594, 7
    %v605 = vsel %vm604, %v602, %v603
    %v606 = vsel %vm604, %v603, %v602
    %v607 = vmul.f32 %v605, %v61
    %v608 = vmul.f32 %v606, %v62
    %v609 = vadd.f32 %v600, %v607
    %v610 = vadd.f32 %v601, %v608
    %v611 = vxor.u32 %v609, 2147483648
    %v612 = vxor.u32 %v610, 2147483648
    %v613 = vmul.f32 %v611, 1.442695
    %v614 = vpow.pop %v613
    %v615 = vmul.f32 %v612, 1.442695
    %v616 = vpow.pop %v615
    %v617 = vadd.f32 %v614, 1.0
    %v618 = vadd.f32 %v616, 1.0
    %v619 = vrcp.pop %v617
    %v620 = vmul.f32 1.0, %v619
    %v621 = vrcp.pop %v618
    %v622 = vmul.f32 1.0, %v621
    %624 = vset.pattern.permute.xlu0 0
    %625 = vperm.xlu0 %624, %v620
    %v626 = vpop.permute.xlu0 %625
    %629 = vset.pattern.permute.xlu0 0
    %630 = vperm.xlu0 %629, %v622
    %v631 = vpop.permute.xlu0 %630
    %v633 = vmul.f32 %v577, %v626
    %v634 = vmul.f32 %v578, %v626
    %v635 = vmul.f32 %v579, %v631
    %v636 = vmul.f32 %v580, %v631
    %638 = vset.pattern.permute.xlu0 0
    %639 = vperm.xlu0 %638, %v64
    %v640 = vpop.permute.xlu0 %639
    %vm642 = vcmask 130048
    %v644 = vsel %vm642, %v63, 0
    %646 = vmatprep.subr.mxu0 %v634
    %647 = vmatpush1.msra.mxu0 %v633
    %648 = vmatprep.subr.mxu0 %v636
    %649 = vmatpush1.msra.mxu0 %v635
    %650 = vmatprep.subr.mxu0 0.0
    %651 = vmatpush1.msra.mxu0 0.0
    %652 = vmatprep.subr.mxu0 0.0
    %653 = vmatpush1.msra.mxu0 0.0
    %654 = vmatprep.subr.mxu0 0.0
    %655 = vmatpush1.msra.mxu0 0.0
    %656 = vmatprep.subr.mxu0 0.0
    %657 = vmatpush1.msra.mxu0 0.0
    %658 = vmatprep.subr.mxu0 0.0
    %659 = vmatpush1.msra.mxu0 0.0
    %660 = vmatprep.subr.mxu0 0.0
    %661 = vmatpush1.msra.mxu0 0.0
    %662 = vmatprep.subr.mxu0 0.0
    %663 = vmatpush1.msra.mxu0 0.0
    %664 = vmatprep.subr.mxu0 0.0
    %665 = vmatpush1.msra.mxu0 0.0
    %666 = vmatprep.subr.mxu0 0.0
    %667 = vmatpush1.msra.mxu0 0.0
    %668 = vmatprep.subr.mxu0 0.0
    %669 = vmatpush1.msra.mxu0 0.0
    %670 = vmatprep.subr.mxu0 0.0
    %671 = vmatpush1.msra.mxu0 0.0
    %672 = vmatprep.subr.mxu0 0.0
    %673 = vmatpush1.msra.mxu0 0.0
    %674 = vmatprep.subr.mxu0 0.0
    %675 = vmatpush1.msra.mxu0 0.0
    %676 = vmatprep.subr.mxu0 0.0
    %677 = vmatpush1.msra.mxu0 0.0
    %678 = vmatprep.subr.mxu0 0.0
    %679 = vmatpush1.msra.mxu0 0.0
    %680 = vmatprep.subr.mxu0 0.0
    %681 = vmatpush1.msra.mxu0 0.0
    %682 = vmatprep.subr.mxu0 0.0
    %683 = vmatpush1.msra.mxu0 0.0
    %684 = vmatprep.subr.mxu0 0.0
    %685 = vmatpush1.msra.mxu0 0.0
    %686 = vmatprep.subr.mxu0 0.0
    %687 = vmatpush1.msra.mxu0 0.0
    %688 = vmatprep.subr.mxu0 0.0
    %689 = vmatpush1.msra.mxu0 0.0
    %690 = vmatprep.subr.mxu0 0.0
    %691 = vmatpush1.msra.mxu0 0.0
    %692 = vmatprep.subr.mxu0 0.0
    %693 = vmatpush1.msra.mxu0 0.0
    %694 = vmatprep.subr.mxu0 0.0
    %695 = vmatpush1.msra.mxu0 0.0
    %696 = vmatprep.subr.mxu0 0.0
    %697 = vmatpush1.msra.mxu0 0.0
    %698 = vmatprep.subr.mxu0 0.0
    %699 = vmatpush1.msra.mxu0 0.0
    %700 = vmatprep.subr.mxu0 0.0
    %701 = vmatpush1.msra.mxu0 0.0
    %702 = vmatprep.subr.mxu0 0.0
    %703 = vmatpush1.msra.mxu0 0.0
    %704 = vmatprep.subr.mxu0 0.0
    %705 = vmatpush1.msra.mxu0 0.0
    %706 = vmatprep.subr.mxu0 0.0
    %707 = vmatpush1.msra.mxu0 0.0
    %708 = vmatprep.subr.mxu0 0.0
    %709 = vmatpush1.msra.mxu0 0.0
    %710 = vmatprep.mubr.f32.mxu0 0.0
    %711 = vmatmul.mubr.f32.gmra.mrb[0].mxu0 %v644
    %v712 = vpop.f32.mrb[0].mxu0
    %v713 = vadd.f32 %v640, %v712
    %v714 = vpop.f32.mrb[0].mxu0
    %v715 = vadd.f32 %v640, %v714
    %716 = vdwg.mxu0
    %v718 = vadd.f32 %v713, %v73
    %v719 = vadd.f32 %v715, %v85
    %v722 = vcombine.low %v718, %v719
    %724 = vst [vmem:[#allocation2] sm:$0xff] %v722
    %s725 = scalar_lea.vmem %s0, 8
    %v726 = vld [vmem:[%s725] sm:$0xff]
    %v728 = vcombine.high %v726, %v726
    %v729 = vsel %vm93, %v726, 0
    %v731 = vsel %vm93, %v728, 0
    %733 = vmatprep.subr.mxu0 %v731
    %734 = vmatpush1.msra.mxu0 %v729
    %735 = vmatprep.subr.mxu0 0.0
    %736 = vmatpush1.msra.mxu0 0.0
    %737 = vmatprep.subr.mxu0 0.0
    %738 = vmatpush1.msra.mxu0 0.0
    %739 = vmatprep.subr.mxu0 0.0
    %740 = vmatpush1.msra.mxu0 0.0
    %741 = vmatprep.subr.mxu0 0.0
    %742 = vmatpush1.msra.mxu0 0.0
    %743 = vmatprep.subr.mxu0 0.0
    %744 = vmatpush1.msra.mxu0 0.0
    %745 = vmatprep.subr.mxu0 0.0
    %746 = vmatpush1.msra.mxu0 0.0
    %747 = vmatprep.subr.mxu0 0.0
    %748 = vmatpush1.msra.mxu0 0.0
    %749 = vmatprep.subr.mxu0 0.0
    %750 = vmatpush1.msra.mxu0 0.0
    %751 = vmatprep.subr.mxu0 0.0
    %752 = vmatpush1.msra.mxu0 0.0
    %753 = vmatprep.subr.mxu0 0.0
    %754 = vmatpush1.msra.mxu0 0.0
    %755 = vmatprep.subr.mxu0 0.0
    %756 = vmatpush1.msra.mxu0 0.0
    %757 = vmatprep.subr.mxu0 0.0
    %758 = vmatpush1.msra.mxu0 0.0
    %759 = vmatprep.subr.mxu0 0.0
    %760 = vmatpush1.msra.mxu0 0.0
    %761 = vmatprep.subr.mxu0 0.0
    %762 = vmatpush1.msra.mxu0 0.0
    %763 = vmatprep.subr.mxu0 0.0
    %764 = vmatpush1.msra.mxu0 0.0
    %765 = vmatprep.subr.mxu0 0.0
    %766 = vmatpush1.msra.mxu0 0.0
    %767 = vmatprep.subr.mxu0 0.0
    %768 = vmatpush1.msra.mxu0 0.0
    %769 = vmatprep.subr.mxu0 0.0
    %770 = vmatpush1.msra.mxu0 0.0
    %771 = vmatprep.subr.mxu0 0.0
    %772 = vmatpush1.msra.mxu0 0.0
    %773 = vmatprep.subr.mxu0 0.0
    %774 = vmatpush1.msra.mxu0 0.0
    %775 = vmatprep.subr.mxu0 0.0
    %776 = vmatpush1.msra.mxu0 0.0
    %777 = vmatprep.subr.mxu0 0.0
    %778 = vmatpush1.msra.mxu0 0.0
    %779 = vmatprep.subr.mxu0 0.0
    %780 = vmatpush1.msra.mxu0 0.0
    %781 = vmatprep.subr.mxu0 0.0
    %782 = vmatpush1.msra.mxu0 0.0
    %783 = vmatprep.subr.mxu0 0.0
    %784 = vmatpush1.msra.mxu0 0.0
    %785 = vmatprep.subr.mxu0 0.0
    %786 = vmatpush1.msra.mxu0 0.0
    %787 = vmatprep.subr.mxu0 0.0
    %788 = vmatpush1.msra.mxu0 0.0
    %789 = vmatprep.subr.mxu0 0.0
    %790 = vmatpush1.msra.mxu0 0.0
    %791 = vmatprep.subr.mxu0 0.0
    %792 = vmatpush1.msra.mxu0 0.0
    %793 = vmatprep.subr.mxu0 0.0
    %794 = vmatpush1.msra.mxu0 0.0
    %795 = vmatprep.subr.mxu0 0.0
    %796 = vmatpush1.msra.mxu0 0.0
    %797 = vmatprep.mubr.f32.mxu0 0.0
    %798 = vmatmul.mubr.f32.gmra.mrb[0].mxu0 %v88
    %v799 = vpop.f32.mrb[0].mxu0
    %v800 = vadd.f32 %v77, %v799
    %v801 = vpop.f32.mrb[0].mxu0
    %v802 = vadd.f32 %v77, %v801
    %803 = vmatprep.mubr.f32.mxu0 0.0
    %804 = vmatmul.mubr.f32.gmra.mrb[0].mxu0 %v91
    %v805 = vpop.f32.mrb[0].mxu0
    %v806 = vadd.f32 %v82, %v805
    %v807 = vpop.f32.mrb[0].mxu0
    %v808 = vadd.f32 %v82, %v807
    %809 = vdwg.mxu0
    %v810 = vmax.f32 %v800, 0.0
    %v811 = vmax.f32 %v802, 0.0
    %v812 = vmax.f32 %v806, 0.0
    %v813 = vmax.f32 %v808, 0.0
    %v814 = vmin.f32 %v810, 6.0
    %v815 = vmin.f32 %v811, 6.0
    %v816 = vmin.f32 %v812, 6.0
    %v817 = vmin.f32 %v813, 6.0
    %v818 = vmul.f32 %v814, %v186
    %v819 = vmul.f32 %v815, %v186
    %v820 = vmul.f32 %v816, %v191
    %v821 = vmul.f32 %v817, %v191
    %822 = vrot.lane.b32.xlu0 %v814, 17
    %v823 = vpop.permute.xlu0 %822
    %824 = vrot.lane.b32.xlu0 %v816, 17
    %v825 = vpop.permute.xlu0 %824
    %826 = vrot.lane.b32.xlu0 %v815, 17
    %v827 = vpop.permute.xlu0 %826
    %828 = vrot.lane.b32.xlu0 %v817, 17
    %v829 = vpop.permute.xlu0 %828
    %v830 = vsel %vm207, %v823, %v827
    %v831 = vsel %vm207, %v825, %v829
    %v832 = vsel %vm207, %v827, %v823
    %v833 = vsel %vm207, %v829, %v825
    %v834 = vmul.f32 %v832, %v216
    %v835 = vmul.f32 %v830, %v220
    %v836 = vmul.f32 %v833, %v216
    %v837 = vmul.f32 %v831, %v220
    %v838 = vmul.f32 %v834, %v230
    %v839 = vmul.f32 %v835, %v230
    %v840 = vmul.f32 %v836, %v235
    %v841 = vmul.f32 %v837, %v235
    %v842 = vadd.f32 %v818, %v838
    %v843 = vadd.f32 %v819, %v839
    %v844 = vadd.f32 %v820, %v840
    %v845 = vadd.f32 %v821, %v841
    %846 = vrot.lane.b32.xlu0 %v814, 16
    %v847 = vpop.permute.xlu0 %846
    %848 = vrot.lane.b32.xlu0 %v816, 16
    %v849 = vpop.permute.xlu0 %848
    %850 = vrot.lane.b32.xlu0 %v815, 16
    %v851 = vpop.permute.xlu0 %850
    %852 = vrot.lane.b32.xlu0 %v817, 16
    %v853 = vpop.permute.xlu0 %852
    %v854 = vsel %vm253, %v847, %v851
    %v855 = vsel %vm253, %v849, %v853
    %v856 = vsel %vm253, %v851, %v847
    %v857 = vsel %vm253, %v853, %v849
    %v858 = vmul.f32 %v856, %v262
    %v859 = vmul.f32 %v854, %v266
    %v860 = vmul.f32 %v857, %v262
    %v861 = vmul.f32 %v855, %v266
    %v862 = vmul.f32 %v858, %v276
    %v863 = vmul.f32 %v859, %v276
    %v864 = vmul.f32 %v860, %v281
    %v865 = vmul.f32 %v861, %v281
    %v866 = vadd.f32 %v842, %v862
    %v867 = vadd.f32 %v843, %v863
    %v868 = vadd.f32 %v844, %v864
    %v869 = vadd.f32 %v845, %v865
    %870 = vrot.lane.b32.xlu0 %v814, 15
    %v871 = vpop.permute.xlu0 %870
    %872 = vrot.lane.b32.xlu0 %v816, 15
    %v873 = vpop.permute.xlu0 %872
    %874 = vrot.lane.b32.xlu0 %v815, 15
    %v875 = vpop.permute.xlu0 %874
    %876 = vrot.lane.b32.xlu0 %v817, 15
    %v877 = vpop.permute.xlu0 %876
    %v878 = vsel %vm299, %v871, %v875
    %v879 = vsel %vm299, %v873, %v877
    %v880 = vsel %vm299, %v875, %v871
    %v881 = vsel %vm299, %v877, %v873
    %v882 = vmul.f32 %v880, %v308
    %v883 = vmul.f32 %v878, %v312
    %v884 = vmul.f32 %v881, %v308
    %v885 = vmul.f32 %v879, %v312
    %v886 = vmul.f32 %v882, %v322
    %v887 = vmul.f32 %v883, %v322
    %v888 = vmul.f32 %v884, %v327
    %v889 = vmul.f32 %v885, %v327
    %v890 = vadd.f32 %v866, %v886
    %v891 = vadd.f32 %v867, %v887
    %v892 = vadd.f32 %v868, %v888
    %v893 = vadd.f32 %v869, %v889
    %894 = vrot.lane.b32.xlu0 %v814, 1
    %v895 = vpop.permute.xlu0 %894
    %896 = vrot.lane.b32.xlu0 %v816, 1
    %v897 = vpop.permute.xlu0 %896
    %898 = vrot.lane.b32.xlu0 %v815, 1
    %v899 = vpop.permute.xlu0 %898
    %900 = vrot.lane.b32.xlu0 %v817, 1
    %v901 = vpop.permute.xlu0 %900
    %v902 = vsel %vm345, %v895, %v899
    %v903 = vsel %vm345, %v897, %v901
    %v904 = vsel %vm345, %v899, %v895
    %v905 = vsel %vm345, %v901, %v897
    %v906 = vmul.f32 %v904, %v354
    %v907 = vmul.f32 %v902, %v358
    %v908 = vmul.f32 %v905, %v354
    %v909 = vmul.f32 %v903, %v358
    %v910 = vmul.f32 %v906, %v368
    %v911 = vmul.f32 %v907, %v368
    %v912 = vmul.f32 %v908, %v373
    %v913 = vmul.f32 %v909, %v373
    %v914 = vadd.f32 %v890, %v910
    %v915 = vadd.f32 %v891, %v911
    %v916 = vadd.f32 %v892, %v912
    %v917 = vadd.f32 %v893, %v913
    %918 = vrot.lane.b32.xlu0 %v814, 127
    %v919 = vpop.permute.xlu0 %918
    %920 = vrot.lane.b32.xlu0 %v816, 127
    %v921 = vpop.permute.xlu0 %920
    %922 = vrot.lane.b32.xlu0 %v815, 127
    %v923 = vpop.permute.xlu0 %922
    %924 = vrot.lane.b32.xlu0 %v817, 127
    %v925 = vpop.permute.xlu0 %924
    %v926 = vsel %vm391, %v919, %v923
    %v927 = vsel %vm391, %v921, %v925
    %v928 = vsel %vm391, %v923, %v919
    %v929 = vsel %vm391, %v925, %v921
    %v930 = vmul.f32 %v926, %v400
    %v931 = vmul.f32 %v928, %v404
    %v932 = vmul.f32 %v927, %v400
    %v933 = vmul.f32 %v929, %v404
    %v934 = vmul.f32 %v930, %v414
    %v935 = vmul.f32 %v931, %v414
    %v936 = vmul.f32 %v932, %v419
    %v937 = vmul.f32 %v933, %v419
    %v938 = vadd.f32 %v914, %v934
    %v939 = vadd.f32 %v915, %v935
    %v940 = vadd.f32 %v916, %v936
    %v941 = vadd.f32 %v917, %v937
    %942 = vrot.lane.b32.xlu0 %v814, 113
    %v943 = vpop.permute.xlu0 %942
    %944 = vrot.lane.b32.xlu0 %v816, 113
    %v945 = vpop.permute.xlu0 %944
    %946 = vrot.lane.b32.xlu0 %v815, 113
    %v947 = vpop.permute.xlu0 %946
    %948 = vrot.lane.b32.xlu0 %v817, 113
    %v949 = vpop.permute.xlu0 %948
    %v950 = vsel %vm437, %v943, %v947
    %v951 = vsel %vm437, %v945, %v949
    %v952 = vsel %vm437, %v947, %v943
    %v953 = vsel %vm437, %v949, %v945
    %v954 = vmul.f32 %v950, %v446
    %v955 = vmul.f32 %v952, %v450
    %v956 = vmul.f32 %v951, %v446
    %v957 = vmul.f32 %v953, %v450
    %v958 = vmul.f32 %v954, %v460
    %v959 = vmul.f32 %v955, %v460
    %v960 = vmul.f32 %v956, %v465
    %v961 = vmul.f32 %v957, %v465
    %v962 = vadd.f32 %v938, %v958
    %v963 = vadd.f32 %v939, %v959
    %v964 = vadd.f32 %v940, %v960
    %v965 = vadd.f32 %v941, %v961
    %966 = vrot.lane.b32.xlu0 %v814, 112
    %v967 = vpop.permute.xlu0 %966
    %968 = vrot.lane.b32.xlu0 %v816, 112
    %v969 = vpop.permute.xlu0 %968
    %970 = vrot.lane.b32.xlu0 %v815, 112
    %v971 = vpop.permute.xlu0 %970
    %972 = vrot.lane.b32.xlu0 %v817, 112
    %v973 = vpop.permute.xlu0 %972
    %v974 = vsel %vm483, %v967, %v971
    %v975 = vsel %vm483, %v969, %v973
    %v976 = vsel %vm483, %v971, %v967
    %v977 = vsel %vm483, %v973, %v969
    %v978 = vmul.f32 %v974, %v492
    %v979 = vmul.f32 %v976, %v496
    %v980 = vmul.f32 %v975, %v492
    %v981 = vmul.f32 %v977, %v496
    %v982 = vmul.f32 %v978, %v506
    %v983 = vmul.f32 %v979, %v506
    %v984 = vmul.f32 %v980, %v511
    %v985 = vmul.f32 %v981, %v511
    %v986 = vadd.f32 %v962, %v982
    %v987 = vadd.f32 %v963, %v983
    %v988 = vadd.f32 %v964, %v984
    %v989 = vadd.f32 %v965, %v985
    %990 = vrot.lane.b32.xlu0 %v814, 111
    %v991 = vpop.permute.xlu0 %990
    %992 = vrot.lane.b32.xlu0 %v816, 111
    %v993 = vpop.permute.xlu0 %992
    %994 = vrot.lane.b32.xlu0 %v815, 111
    %v995 = vpop.permute.xlu0 %994
    %996 = vrot.lane.b32.xlu0 %v817, 111
    %v997 = vpop.permute.xlu0 %996
    %v998 = vsel %vm529, %v991, %v995
    %v999 = vsel %vm529, %v993, %v997
    %v1000 = vsel %vm529, %v995, %v991
    %v1001 = vsel %vm529, %v997, %v993
    %v1002 = vmul.f32 %v998, %v538
    %v1003 = vmul.f32 %v1000, %v542
    %v1004 = vmul.f32 %v999, %v538
    %v1005 = vmul.f32 %v1001, %v542
    %v1006 = vmul.f32 %v1002, %v552
    %v1007 = vmul.f32 %v1003, %v552
    %v1008 = vmul.f32 %v1004, %v557
    %v1009 = vmul.f32 %v1005, %v557
    %v1010 = vadd.f32 %v986, %v1006
    %v1011 = vadd.f32 %v987, %v1007
    %v1012 = vadd.f32 %v988, %v1008
    %v1013 = vadd.f32 %v989, %v1009
    %v1014 = vadd.f32 %v1010, %v570
    %v1015 = vadd.f32 %v1011, %v570
    %v1016 = vadd.f32 %v1012, %v575
    %v1017 = vadd.f32 %v1013, %v575
    %v1018 = vadd.f32 %v1014, %v1015
    %1019 = vadd.xlane.f32.xlu0 %v1018
    %v1020 = vpop.xlane.xlu0 %1019
    %v1021 = vadd.f32 %v1016, %v1017
    %1022 = vadd.xlane.f32.xlu0 %v1021
    %v1023 = vpop.xlane.xlu0 %1022
    %v1024 = vmul.f32 %v1020, 0.00390625
    %v1025 = vmul.f32 %v1023, 0.00390625
    %v1026 = vmul.f32 %v1024, %v59
    %v1027 = vmul.f32 %v1025, %v60
    %v1028 = vrot.slane %v1024, 7
    %v1029 = vrot.slane %v1025, 7
    %v1030 = vsel %vm595, %v1028, %v1029
    %v1031 = vsel %vm595, %v1029, %v1028
    %v1032 = vmul.f32 %v1031, %v57
    %v1033 = vmul.f32 %v1030, %v58
    %v1034 = vadd.f32 %v1026, %v1032
    %v1035 = vadd.f32 %v1027, %v1033
    %v1036 = vrot.slane %v1024, 1
    %v1037 = vrot.slane %v1025, 1
    %v1038 = vsel %vm604, %v1036, %v1037
    %v1039 = vsel %vm604, %v1037, %v1036
    %v1040 = vmul.f32 %v1038, %v61
    %v1041 = vmul.f32 %v1039, %v62
    %v1042 = vadd.f32 %v1034, %v1040
    %v1043 = vadd.f32 %v1035, %v1041
    %v1044 = vxor.u32 %v1042, 2147483648
    %v1045 = vxor.u32 %v1043, 2147483648
    %v1046 = vmul.f32 %v1044, 1.442695
    %v1047 = vpow.pop %v1046
    %v1048 = vmul.f32 %v1045, 1.442695
    %v1049 = vpow.pop %v1048
    %v1050 = vadd.f32 %v1047, 1.0
    %v1051 = vadd.f32 %v1049, 1.0
    %v1052 = vrcp.pop %v1050
    %v1053 = vmul.f32 1.0, %v1052
    %v1054 = vrcp.pop %v1051
    %v1055 = vmul.f32 1.0, %v1054
    %1057 = vset.pattern.permute.xlu0 0
    %1058 = vperm.xlu0 %1057, %v1053
    %v1059 = vpop.permute.xlu0 %1058
    %1062 = vset.pattern.permute.xlu0 0
    %1063 = vperm.xlu0 %1062, %v1055
    %v1064 = vpop.permute.xlu0 %1063
    %v1066 = vmul.f32 %v1014, %v1059
    %v1067 = vmul.f32 %v1015, %v1059
    %v1068 = vmul.f32 %v1016, %v1064
    %v1069 = vmul.f32 %v1017, %v1064
    %1070 = vmatprep.subr.mxu0 %v1067
    %1071 = vmatpush1.msra.mxu0 %v1066
    %1072 = vmatprep.subr.mxu0 %v1069
    %1073 = vmatpush1.msra.mxu0 %v1068
    %1074 = vmatprep.subr.mxu0 0.0
    %1075 = vmatpush1.msra.mxu0 0.0
    %1076 = vmatprep.subr.mxu0 0.0
    %1077 = vmatpush1.msra.mxu0 0.0
    %1078 = vmatprep.subr.mxu0 0.0
    %1079 = vmatpush1.msra.mxu0 0.0
    %1080 = vmatprep.subr.mxu0 0.0
    %1081 = vmatpush1.msra.mxu0 0.0
    %1082 = vmatprep.subr.mxu0 0.0
    %1083 = vmatpush1.msra.mxu0 0.0
    %1084 = vmatprep.subr.mxu0 0.0
    %1085 = vmatpush1.msra.mxu0 0.0
    %1086 = vmatprep.subr.mxu0 0.0
    %1087 = vmatpush1.msra.mxu0 0.0
    %1088 = vmatprep.subr.mxu0 0.0
    %1089 = vmatpush1.msra.mxu0 0.0
    %1090 = vmatprep.subr.mxu0 0.0
    %1091 = vmatpush1.msra.mxu0 0.0
    %1092 = vmatprep.subr.mxu0 0.0
    %1093 = vmatpush1.msra.mxu0 0.0
    %1094 = vmatprep.subr.mxu0 0.0
    %1095 = vmatpush1.msra.mxu0 0.0
    %1096 = vmatprep.subr.mxu0 0.0
    %1097 = vmatpush1.msra.mxu0 0.0
    %1098 = vmatprep.subr.mxu0 0.0
    %1099 = vmatpush1.msra.mxu0 0.0
    %1100 = vmatprep.subr.mxu0 0.0
    %1101 = vmatpush1.msra.mxu0 0.0
    %1102 = vmatprep.subr.mxu0 0.0
    %1103 = vmatpush1.msra.mxu0 0.0
    %1104 = vmatprep.subr.mxu0 0.0
    %1105 = vmatpush1.msra.mxu0 0.0
    %1106 = vmatprep.subr.mxu0 0.0
    %1107 = vmatpush1.msra.mxu0 0.0
    %1108 = vmatprep.subr.mxu0 0.0
    %1109 = vmatpush1.msra.mxu0 0.0
    %1110 = vmatprep.subr.mxu0 0.0
    %1111 = vmatpush1.msra.mxu0 0.0
    %1112 = vmatprep.subr.mxu0 0.0
    %1113 = vmatpush1.msra.mxu0 0.0
    %1114 = vmatprep.subr.mxu0 0.0
    %1115 = vmatpush1.msra.mxu0 0.0
    %1116 = vmatprep.subr.mxu0 0.0
    %1117 = vmatpush1.msra.mxu0 0.0
    %1118 = vmatprep.subr.mxu0 0.0
    %1119 = vmatpush1.msra.mxu0 0.0
    %1120 = vmatprep.subr.mxu0 0.0
    %1121 = vmatpush1.msra.mxu0 0.0
    %1122 = vmatprep.subr.mxu0 0.0
    %1123 = vmatpush1.msra.mxu0 0.0
    %1124 = vmatprep.subr.mxu0 0.0
    %1125 = vmatpush1.msra.mxu0 0.0
    %1126 = vmatprep.subr.mxu0 0.0
    %1127 = vmatpush1.msra.mxu0 0.0
    %1128 = vmatprep.subr.mxu0 0.0
    %1129 = vmatpush1.msra.mxu0 0.0
    %1130 = vmatprep.subr.mxu0 0.0
    %1131 = vmatpush1.msra.mxu0 0.0
    %1132 = vmatprep.subr.mxu0 0.0
    %1133 = vmatpush1.msra.mxu0 0.0
    %1134 = vmatprep.mubr.f32.mxu0 0.0
    %1135 = vmatmul.mubr.f32.gmra.mrb[0].mxu0 %v644
    %v1136 = vpop.f32.mrb[0].mxu0
    %v1137 = vadd.f32 %v640, %v1136
    %v1138 = vpop.f32.mrb[0].mxu0
    %v1139 = vadd.f32 %v640, %v1138
    %1140 = vdwg.mxu0
    %v1142 = vadd.f32 %v1137, %v726
    %v1143 = vadd.f32 %v1139, %v728
    %v1146 = vcombine.low %v1142, %v1143
    %s1148 = scalar_lea.vmem [#allocation2], 8
    %1149 = vst [vmem:[%s1148] sm:$0xff] %v1146
    // Predicated region
    $region38: #{tpu_custom_call.1} parent=1 // pred_check
      _
    $region39: #{tpu_custom_call.1} parent=1 // pred_check_branch
      %1151 = sbr.rel (0) target = $region41
    $region40: #{tpu_custom_call.1} parent=1 // pred_region
      %s1153 = ssub.s32 256, 256
      %1154 = vsyncadd [#allocation3], %s1153
      %s1155 = sshll.u32 [#allocation2], 4
      %s1156 = int_to_ptr.vmem [resolvable:$true] %s1155
      %1161 = dma.vmem_to_hbm [thread:$0]  %s1156, 256, %s9, [#allocation3], 128, 128, 8
    $region41: #{tpu_custom_call.1} parent=1 // pred_fallthru
      _
    // Predicated region
    $region42: #{tpu_custom_call.1} parent=1 // pred_check
      _
    $region43: #{tpu_custom_call.1} parent=1 // pred_check_branch
      %1163 = sbr.rel (0) target = $region45
    $region44: #{tpu_custom_call.1} parent=1 // pred_region
      %1164 = dma.done [#allocation3], 256
    $region45: #{tpu_custom_call.1} parent=1 // pred_fallthru
      _
    %1165 = vsyncpa [#allocation3], 1

</llo_original>
